<compile_context>
chip_gen: v7x
topology: tpu7x:2x2x1
jax: 0.10.0
libtpu: 0.0.40
codegen_flags: <defaults>
</compile_context>

<pallas_src>
import functools

import jax
import jax.numpy as jnp
from jax.experimental import pallas as pl
from jax.experimental.pallas import tpu as pltpu


_MIB = 1024 * 1024


def _vmem_capacity_bytes():
    """Physical per-TensorCore VMEM; conservative fallback if the query fails."""
    try:
        info = pltpu.get_tpu_info()
        cap = getattr(info, "vmem_capacity_bytes", None)
        if cap:
            return int(cap)
    except Exception:
        pass
    return 64 * _MIB  # v7x-sized fallback (smallest of v5e/v6e/v7x)


def _block_vmem_bytes(bt, n, c, d_out, gdep, a_item, x_item):
    """Double-buffered blocks + invariants + temp headroom for one grid step."""
    fixed = (2 * n * n * a_item                  # shared support (const index map)
             + 2 * (gdep + 1) * d_out * c * 4    # transposed MLP weight
             + 2 * d_out * 4                     # bias
             + 2 * n * n * 4)                    # headroom: combined-A f32 temporaries
    per = 2 * bt * (n * c * x_item + n * n * a_item + n * d_out * 4)
    return fixed + per


def _pick_bt(b, n, c, d_out, gdep, a_item, x_item, budget, cap=32):
    best = 1
    for bt in range(1, min(b, cap) + 1):
        if b % bt:
            continue
        if _block_vmem_bytes(bt, n, c, d_out, gdep, a_item, x_item) <= budget:
            best = bt
    if best == b and b > 1:        # keep >=2 grid steps so megacore has work
        for smaller in range(best - 1, 0, -1):
            if b % smaller == 0:
                best = smaller
                break
    return best


def _gcrn_kernel(xt_ref, ab_ref, as_ref, wt_ref, b_ref, o_ref, *,
                 gdep, alpha, beta, gamma, mxu_bf16):
    # xt_ref : (Bt, C, N)          features, transposed (node dim in lanes)
    # ab_ref : (Bt, N, N)          batch-specific support, original orientation
    # as_ref : (N, N)              shared support (constant index map)
    # wt_ref : (gdep+1, D_out, C)  per-hop transposed MLP weight slices
    # b_ref  : (1, D_out)          MLP bias
    # o_ref  : (Bt, N, D_out)
    bt = xt_ref.shape[0]
    f32 = jnp.float32
    mxu_dtype = jnp.bfloat16 if mxu_bf16 else f32

    a_shared = gamma * as_ref[...].astype(f32)      # (N, N), hoisted out of batch loop
    wt = wt_ref[...].astype(mxu_dtype)              # (gdep+1, D_out, C)
    bias = b_ref[...].astype(f32)                   # (1, D_out)

    for j in range(bt):                             # static unroll over the batch tile
        # One VPU pass combines both supports; reused for every hop.  No HBM
        # a_comb, no transpose anywhere: the hop contracts over the node dim.
        a_j = (beta * ab_ref[j].astype(f32) + a_shared).astype(mxu_dtype)   # (N, N)
        xt_j = xt_ref[j].astype(f32)                # (C, N)
        xs_j = alpha * xt_j                         # hoisted out of the hop loop

        ht = xt_j                                   # hop-0 features (transposed)
        acc = jnp.dot(wt[0], ht.astype(mxu_dtype),
                      preferred_element_type=f32)   # (D_out, N)
        for k in range(1, gdep + 1):
            # hT <- alpha*xT + hT @ (beta*A_b + gamma*A_s)   — standard 2-D MXU dots
            ht = xs_j + jnp.dot(ht.astype(mxu_dtype), a_j,
                                preferred_element_type=f32)        # (C, N)
            acc = acc + jnp.dot(wt[k], ht.astype(mxu_dtype),
                                preferred_element_type=f32)        # (D_out, N)

        # Small XLU transpose back to the module's (N, D_out) layout + bias add.
        o_ref[j] = (jnp.transpose(acc) + bias).astype(o_ref.dtype)


def gcrn_forward(x, support_b, support_s, w, b, *, gdep, alpha, beta, gamma,
                 bt=None, mxu_bf16=False, support_dtype=None):
    """x: (B,N,C), support_b: (B,N,N), support_s: (N,N),
       w: ((gdep+1)*C, D_out), b: (D_out,)  ->  (B, N, D_out)

    mxu_bf16 / support_dtype=jnp.bfloat16 trade accuracy for MXU rate (v5e) /
    halved support HBM traffic (v6e); both default OFF for f32 1e-4 tolerance.
    """
    B, N, C = x.shape
    D_in, D_out = w.shape
    assert D_in == (gdep + 1) * C

    # Tiny XLA-side layout prep (parameters + x only; the dominant (B,N,N)
    # support stream is passed through untouched — no a_comb materialization).
    xt = jnp.swapaxes(x, 1, 2)                                      # (B, C, N)
    wt3 = jnp.transpose(w.reshape(gdep + 1, C, D_out), (0, 2, 1))   # (g+1, D_out, C)
    b2 = b.reshape(1, D_out)

    if support_dtype is not None:
        support_b = support_b.astype(support_dtype)
        support_s = support_s.astype(support_dtype)

    a_item = jnp.dtype(support_b.dtype).itemsize
    x_item = jnp.dtype(x.dtype).itemsize

    phys = _vmem_capacity_bytes()
    budget = (phys * 7) // 10              # ~45 MiB on v7x, ~90 MiB on v5e/v6e
    if bt is None:
        bt = _pick_bt(B, N, C, D_out, gdep, a_item, x_item, budget)
    assert B % bt == 0
    need = _block_vmem_bytes(bt, N, C, D_out, gdep, a_item, x_item)
    vmem_limit = int(max(32 * _MIB, min((phys * 9) // 10, 2 * need)))

    kernel = functools.partial(_gcrn_kernel, gdep=gdep, alpha=alpha,
                               beta=beta, gamma=gamma, mxu_bf16=mxu_bf16)

    # TODO(synk): if even bt=1 exceeds the budget (very large N on v7x's 64 MiB),
    # tile the support into (N_tile, N) row panels over an extra "arbitrary" grid
    # axis, keeping hT/acc resident in VMEM scratch across panels.
    return pl.pallas_call(
        kernel,
        out_shape=jax.ShapeDtypeStruct((B, N, D_out), x.dtype),
        grid_spec=pltpu.PrefetchScalarGridSpec(
            num_scalar_prefetch=0,
            grid=(B // bt,),
            in_specs=[
                pl.BlockSpec((bt, C, N), lambda i: (i, 0, 0)),
                pl.BlockSpec((bt, N, N), lambda i: (i, 0, 0)),
                pl.BlockSpec((N, N), lambda i: (0, 0)),              # fetched once
                pl.BlockSpec((gdep + 1, D_out, C), lambda i: (0, 0, 0)),
                pl.BlockSpec((1, D_out), lambda i: (0, 0)),
            ],
            out_specs=pl.BlockSpec((bt, N, D_out), lambda i: (i, 0, 0)),
        ),
        compiler_params=pltpu.CompilerParams(
            dimension_semantics=("parallel",),
            vmem_limit_bytes=vmem_limit),
    )(xt, support_b, support_s, wt3, b2)


def gcrn_reference(x, support_b, support_s, w, b, *, gdep, alpha, beta, gamma):
    h = x
    outs = [h]
    for _ in range(gdep):
        h = (alpha * x
             + beta * jnp.einsum('bnc,bnw->bwc', h, support_b)
             + gamma * jnp.einsum('bnc,nw->bwc', h, support_s))
        outs.append(h)
    ho = jnp.concatenate(outs, axis=-1)
    return ho @ w + b


if __name__ == "__main__":
    # Small shapes consistent with the module: dims=(C, D_out), gdep hops.
    B, N, C = 8, 16, 8
    gdep = 2
    D_out = 32
    alpha, beta, gamma = 0.05, 0.475, 0.475

    key = jax.random.PRNGKey(0)
    k_x, k_a, k_a2, k_w, k_b = jax.random.split(key, 5)

    x = jax.random.normal(k_x, (B, N, C), dtype=jnp.float32)
    support_b = jax.nn.softmax(
        jax.random.normal(k_a, (B, N, N), dtype=jnp.float32), axis=-1)
    support_s = jax.nn.softmax(
        jax.random.normal(k_a2, (N, N), dtype=jnp.float32), axis=-1)

    # nn.Linear((gdep+1)*C, D_out) equivalent parameters.
    D_in = (gdep + 1) * C
    bound = 1.0 / (D_in ** 0.5)
    w = jax.random.uniform(k_w, (D_in, D_out), jnp.float32, -bound, bound)
    b = jax.random.uniform(k_b, (D_out,), jnp.float32, -bound, bound)

    out = gcrn_forward(x, support_b, support_s, w, b,
                       gdep=gdep, alpha=alpha, beta=beta, gamma=gamma)
    out = jax.block_until_ready(out)

    ref = gcrn_reference(x, support_b, support_s, w, b,
                         gdep=gdep, alpha=alpha, beta=beta, gamma=gamma)
    assert out.shape == (B, N, D_out)
    assert jnp.allclose(out, ref, atol=1e-4, rtol=1e-4)

    print("KERNEL_OK")
</pallas_src>

<mosaic_0001>
module attributes {stable_mosaic.version = 11 : i64} {
  func.func @_gcrn_kernel(%arg0: i32, %arg1: memref<4x8x16xf32, #tpu.memory_space<vmem>>, %arg2: memref<4x16x16xf32, #tpu.memory_space<vmem>>, %arg3: memref<16x16xf32, #tpu.memory_space<vmem>>, %arg4: memref<3x32x8xf32, #tpu.memory_space<vmem>>, %arg5: memref<1x32xf32, #tpu.memory_space<vmem>>, %arg6: memref<4x16x32xf32, #tpu.memory_space<vmem>>) attributes {dimension_semantics = [#tpu.dimension_semantics<parallel>], iteration_bounds = array<i64: 2>, scalar_prefetch = 0 : i64, scratch_operands = 0 : i64, tpu.core_type = #tpu.core_type<tc>, window_params = [{transform_indices = @transform_0, window_bounds = array<i64: 4, 8, 16>}, {transform_indices = @transform_1, window_bounds = array<i64: 4, 16, 16>}, {pipeline_mode = #tpu.pipeline_mode<synchronous>, transform_indices = @transform_2, window_bounds = array<i64: 16, 16>}, {pipeline_mode = #tpu.pipeline_mode<synchronous>, transform_indices = @transform_3, window_bounds = array<i64: 3, 32, 8>}, {pipeline_mode = #tpu.pipeline_mode<synchronous>, transform_indices = @transform_4, window_bounds = array<i64: 1, 32>}, {transform_indices = @transform_5, window_bounds = array<i64: 4, 16, 32>}]} {
    %c0 = arith.constant 0 : index
    %c0_0 = arith.constant 0 : index
    %0 = vector.load %arg3[%c0, %c0_0] : memref<16x16xf32, #tpu.memory_space<vmem>>, vector<16x16xf32>
    %cst = arith.constant 4.750000e-01 : f32
    %1 = vector.broadcast %cst : f32 to vector<16x16xf32>
    %2 = arith.mulf %1, %0 : vector<16x16xf32>
    %c0_1 = arith.constant 0 : index
    %c0_2 = arith.constant 0 : index
    %c0_3 = arith.constant 0 : index
    %3 = vector.load %arg4[%c0_1, %c0_2, %c0_3] : memref<3x32x8xf32, #tpu.memory_space<vmem>>, vector<3x32x8xf32>
    %c0_4 = arith.constant 0 : index
    %c0_5 = arith.constant 0 : index
    %4 = vector.load %arg5[%c0_4, %c0_5] : memref<1x32xf32, #tpu.memory_space<vmem>>, vector<1x32xf32>
    %c0_6 = arith.constant 0 : index
    %c0_7 = arith.constant 0 : index
    %c0_8 = arith.constant 0 : index
    %5 = vector.load %arg2[%c0_6, %c0_7, %c0_8] : memref<4x16x16xf32, #tpu.memory_space<vmem>>, vector<1x16x16xf32>
    %6 = vector.shape_cast %5 : vector<1x16x16xf32> to vector<16x16xf32>
    %cst_9 = arith.constant 4.750000e-01 : f32
    %7 = vector.broadcast %cst_9 : f32 to vector<16x16xf32>
    %8 = arith.mulf %7, %6 : vector<16x16xf32>
    %9 = arith.addf %8, %2 : vector<16x16xf32>
    %c0_10 = arith.constant 0 : index
    %c0_11 = arith.constant 0 : index
    %c0_12 = arith.constant 0 : index
    %10 = vector.load %arg1[%c0_10, %c0_11, %c0_12] : memref<4x8x16xf32, #tpu.memory_space<vmem>>, vector<1x8x16xf32>
    %11 = vector.shape_cast %10 : vector<1x8x16xf32> to vector<8x16xf32>
    %cst_13 = arith.constant 5.000000e-02 : f32
    %12 = vector.broadcast %cst_13 : f32 to vector<8x16xf32>
    %13 = arith.mulf %12, %11 : vector<8x16xf32>
    %14 = vector.extract_strided_slice %3 {offsets = [0, 0, 0], sizes = [1, 32, 8], strides = [1, 1, 1]} : vector<3x32x8xf32> to vector<1x32x8xf32>
    %15 = vector.shape_cast %14 : vector<1x32x8xf32> to vector<32x8xf32>
    %cst_14 = arith.constant dense<0.000000e+00> : vector<32x16xf32>
    %16 = tpu.matmul %15, %11, %cst_14 {dimension_numbers = #tpu.dot_dimension_numbers<[1], [0], [0], [1], [0, 0, 1, 1], [], []>} : vector<32x8xf32>, vector<8x16xf32>, vector<32x16xf32> -> vector<32x16xf32>
    %cst_15 = arith.constant dense<0.000000e+00> : vector<8x16xf32>
    %17 = tpu.matmul %11, %9, %cst_15 {dimension_numbers = #tpu.dot_dimension_numbers<[1], [0], [0], [1], [0, 0, 1, 1], [], []>} : vector<8x16xf32>, vector<16x16xf32>, vector<8x16xf32> -> vector<8x16xf32>
    %18 = arith.addf %13, %17 : vector<8x16xf32>
    %19 = vector.extract_strided_slice %3 {offsets = [1, 0, 0], sizes = [1, 32, 8], strides = [1, 1, 1]} : vector<3x32x8xf32> to vector<1x32x8xf32>
    %20 = vector.shape_cast %19 : vector<1x32x8xf32> to vector<32x8xf32>
    %cst_16 = arith.constant dense<0.000000e+00> : vector<32x16xf32>
    %21 = tpu.matmul %20, %18, %cst_16 {dimension_numbers = #tpu.dot_dimension_numbers<[1], [0], [0], [1], [0, 0, 1, 1], [], []>} : vector<32x8xf32>, vector<8x16xf32>, vector<32x16xf32> -> vector<32x16xf32>
    %22 = arith.addf %16, %21 : vector<32x16xf32>
    %cst_17 = arith.constant dense<0.000000e+00> : vector<8x16xf32>
    %23 = tpu.matmul %18, %9, %cst_17 {dimension_numbers = #tpu.dot_dimension_numbers<[1], [0], [0], [1], [0, 0, 1, 1], [], []>} : vector<8x16xf32>, vector<16x16xf32>, vector<8x16xf32> -> vector<8x16xf32>
    %24 = arith.addf %13, %23 : vector<8x16xf32>
    %25 = vector.extract_strided_slice %3 {offsets = [2, 0, 0], sizes = [1, 32, 8], strides = [1, 1, 1]} : vector<3x32x8xf32> to vector<1x32x8xf32>
    %26 = vector.shape_cast %25 : vector<1x32x8xf32> to vector<32x8xf32>
    %cst_18 = arith.constant dense<0.000000e+00> : vector<32x16xf32>
    %27 = tpu.matmul %26, %24, %cst_18 {dimension_numbers = #tpu.dot_dimension_numbers<[1], [0], [0], [1], [0, 0, 1, 1], [], []>} : vector<32x8xf32>, vector<8x16xf32>, vector<32x16xf32> -> vector<32x16xf32>
    %28 = arith.addf %22, %27 : vector<32x16xf32>
    %29 = tpu.transpose %28, [1, 0] : vector<32x16xf32> -> vector<16x32xf32>
    %30 = vector.broadcast %4 : vector<1x32xf32> to vector<16x32xf32>
    %31 = arith.addf %29, %30 : vector<16x32xf32>
    %c0_19 = arith.constant 0 : index
    %c0_20 = arith.constant 0 : index
    %c0_21 = arith.constant 0 : index
    %32 = vector.load %arg6[%c0_19, %c0_20, %c0_21] : memref<4x16x32xf32, #tpu.memory_space<vmem>>, vector<1x16x32xf32>
    %33 = vector.shape_cast %32 : vector<1x16x32xf32> to vector<16x32xf32>
    %34 = vector.shape_cast %31 : vector<16x32xf32> to vector<1x16x32xf32>
    tpu.vector_store %arg6[%c0_19, %c0_20, %c0_21], %34 {strides = array<i32>} : memref<4x16x32xf32, #tpu.memory_space<vmem>>, vector<1x16x32xf32>,
    %c1 = arith.constant 1 : index
    %c0_22 = arith.constant 0 : index
    %c0_23 = arith.constant 0 : index
    %35 = vector.load %arg2[%c1, %c0_22, %c0_23] : memref<4x16x16xf32, #tpu.memory_space<vmem>>, vector<1x16x16xf32>
    %36 = vector.shape_cast %35 : vector<1x16x16xf32> to vector<16x16xf32>
    %cst_24 = arith.constant 4.750000e-01 : f32
    %37 = vector.broadcast %cst_24 : f32 to vector<16x16xf32>
    %38 = arith.mulf %37, %36 : vector<16x16xf32>
    %39 = arith.addf %38, %2 : vector<16x16xf32>
    %c1_25 = arith.constant 1 : index
    %c0_26 = arith.constant 0 : index
    %c0_27 = arith.constant 0 : index
    %40 = vector.load %arg1[%c1_25, %c0_26, %c0_27] : memref<4x8x16xf32, #tpu.memory_space<vmem>>, vector<1x8x16xf32>
    %41 = vector.shape_cast %40 : vector<1x8x16xf32> to vector<8x16xf32>
    %cst_28 = arith.constant 5.000000e-02 : f32
    %42 = vector.broadcast %cst_28 : f32 to vector<8x16xf32>
    %43 = arith.mulf %42, %41 : vector<8x16xf32>
    %44 = vector.extract_strided_slice %3 {offsets = [0, 0, 0], sizes = [1, 32, 8], strides = [1, 1, 1]} : vector<3x32x8xf32> to vector<1x32x8xf32>
    %45 = vector.shape_cast %44 : vector<1x32x8xf32> to vector<32x8xf32>
    %cst_29 = arith.constant dense<0.000000e+00> : vector<32x16xf32>
    %46 = tpu.matmul %45, %41, %cst_29 {dimension_numbers = #tpu.dot_dimension_numbers<[1], [0], [0], [1], [0, 0, 1, 1], [], []>} : vector<32x8xf32>, vector<8x16xf32>, vector<32x16xf32> -> vector<32x16xf32>
    %cst_30 = arith.constant dense<0.000000e+00> : vector<8x16xf32>
    %47 = tpu.matmul %41, %39, %cst_30 {dimension_numbers = #tpu.dot_dimension_numbers<[1], [0], [0], [1], [0, 0, 1, 1], [], []>} : vector<8x16xf32>, vector<16x16xf32>, vector<8x16xf32> -> vector<8x16xf32>
    %48 = arith.addf %43, %47 : vector<8x16xf32>
    %49 = vector.extract_strided_slice %3 {offsets = [1, 0, 0], sizes = [1, 32, 8], strides = [1, 1, 1]} : vector<3x32x8xf32> to vector<1x32x8xf32>
    %50 = vector.shape_cast %49 : vector<1x32x8xf32> to vector<32x8xf32>
    %cst_31 = arith.constant dense<0.000000e+00> : vector<32x16xf32>
    %51 = tpu.matmul %50, %48, %cst_31 {dimension_numbers = #tpu.dot_dimension_numbers<[1], [0], [0], [1], [0, 0, 1, 1], [], []>} : vector<32x8xf32>, vector<8x16xf32>, vector<32x16xf32> -> vector<32x16xf32>
    %52 = arith.addf %46, %51 : vector<32x16xf32>
    %cst_32 = arith.constant dense<0.000000e+00> : vector<8x16xf32>
    %53 = tpu.matmul %48, %39, %cst_32 {dimension_numbers = #tpu.dot_dimension_numbers<[1], [0], [0], [1], [0, 0, 1, 1], [], []>} : vector<8x16xf32>, vector<16x16xf32>, vector<8x16xf32> -> vector<8x16xf32>
    %54 = arith.addf %43, %53 : vector<8x16xf32>
    %55 = vector.extract_strided_slice %3 {offsets = [2, 0, 0], sizes = [1, 32, 8], strides = [1, 1, 1]} : vector<3x32x8xf32> to vector<1x32x8xf32>
    %56 = vector.shape_cast %55 : vector<1x32x8xf32> to vector<32x8xf32>
    %cst_33 = arith.constant dense<0.000000e+00> : vector<32x16xf32>
    %57 = tpu.matmul %56, %54, %cst_33 {dimension_numbers = #tpu.dot_dimension_numbers<[1], [0], [0], [1], [0, 0, 1, 1], [], []>} : vector<32x8xf32>, vector<8x16xf32>, vector<32x16xf32> -> vector<32x16xf32>
    %58 = arith.addf %52, %57 : vector<32x16xf32>
    %59 = tpu.transpose %58, [1, 0] : vector<32x16xf32> -> vector<16x32xf32>
    %60 = vector.broadcast %4 : vector<1x32xf32> to vector<16x32xf32>
    %61 = arith.addf %59, %60 : vector<16x32xf32>
    %c1_34 = arith.constant 1 : index
    %c0_35 = arith.constant 0 : index
    %c0_36 = arith.constant 0 : index
    %62 = vector.load %arg6[%c1_34, %c0_35, %c0_36] : memref<4x16x32xf32, #tpu.memory_space<vmem>>, vector<1x16x32xf32>
    %63 = vector.shape_cast %62 : vector<1x16x32xf32> to vector<16x32xf32>
    %64 = vector.shape_cast %61 : vector<16x32xf32> to vector<1x16x32xf32>
    tpu.vector_store %arg6[%c1_34, %c0_35, %c0_36], %64 {strides = array<i32>} : memref<4x16x32xf32, #tpu.memory_space<vmem>>, vector<1x16x32xf32>,
    %c2 = arith.constant 2 : index
    %c0_37 = arith.constant 0 : index
    %c0_38 = arith.constant 0 : index
    %65 = vector.load %arg2[%c2, %c0_37, %c0_38] : memref<4x16x16xf32, #tpu.memory_space<vmem>>, vector<1x16x16xf32>
    %66 = vector.shape_cast %65 : vector<1x16x16xf32> to vector<16x16xf32>
    %cst_39 = arith.constant 4.750000e-01 : f32
    %67 = vector.broadcast %cst_39 : f32 to vector<16x16xf32>
    %68 = arith.mulf %67, %66 : vector<16x16xf32>
    %69 = arith.addf %68, %2 : vector<16x16xf32>
    %c2_40 = arith.constant 2 : index
    %c0_41 = arith.constant 0 : index
    %c0_42 = arith.constant 0 : index
    %70 = vector.load %arg1[%c2_40, %c0_41, %c0_42] : memref<4x8x16xf32, #tpu.memory_space<vmem>>, vector<1x8x16xf32>
    %71 = vector.shape_cast %70 : vector<1x8x16xf32> to vector<8x16xf32>
    %cst_43 = arith.constant 5.000000e-02 : f32
    %72 = vector.broadcast %cst_43 : f32 to vector<8x16xf32>
    %73 = arith.mulf %72, %71 : vector<8x16xf32>
    %74 = vector.extract_strided_slice %3 {offsets = [0, 0, 0], sizes = [1, 32, 8], strides = [1, 1, 1]} : vector<3x32x8xf32> to vector<1x32x8xf32>
    %75 = vector.shape_cast %74 : vector<1x32x8xf32> to vector<32x8xf32>
    %cst_44 = arith.constant dense<0.000000e+00> : vector<32x16xf32>
    %76 = tpu.matmul %75, %71, %cst_44 {dimension_numbers = #tpu.dot_dimension_numbers<[1], [0], [0], [1], [0, 0, 1, 1], [], []>} : vector<32x8xf32>, vector<8x16xf32>, vector<32x16xf32> -> vector<32x16xf32>
    %cst_45 = arith.constant dense<0.000000e+00> : vector<8x16xf32>
    %77 = tpu.matmul %71, %69, %cst_45 {dimension_numbers = #tpu.dot_dimension_numbers<[1], [0], [0], [1], [0, 0, 1, 1], [], []>} : vector<8x16xf32>, vector<16x16xf32>, vector<8x16xf32> -> vector<8x16xf32>
    %78 = arith.addf %73, %77 : vector<8x16xf32>
    %79 = vector.extract_strided_slice %3 {offsets = [1, 0, 0], sizes = [1, 32, 8], strides = [1, 1, 1]} : vector<3x32x8xf32> to vector<1x32x8xf32>
    %80 = vector.shape_cast %79 : vector<1x32x8xf32> to vector<32x8xf32>
    %cst_46 = arith.constant dense<0.000000e+00> : vector<32x16xf32>
    %81 = tpu.matmul %80, %78, %cst_46 {dimension_numbers = #tpu.dot_dimension_numbers<[1], [0], [0], [1], [0, 0, 1, 1], [], []>} : vector<32x8xf32>, vector<8x16xf32>, vector<32x16xf32> -> vector<32x16xf32>
    %82 = arith.addf %76, %81 : vector<32x16xf32>
    %cst_47 = arith.constant dense<0.000000e+00> : vector<8x16xf32>
    %83 = tpu.matmul %78, %69, %cst_47 {dimension_numbers = #tpu.dot_dimension_numbers<[1], [0], [0], [1], [0, 0, 1, 1], [], []>} : vector<8x16xf32>, vector<16x16xf32>, vector<8x16xf32> -> vector<8x16xf32>
    %84 = arith.addf %73, %83 : vector<8x16xf32>
    %85 = vector.extract_strided_slice %3 {offsets = [2, 0, 0], sizes = [1, 32, 8], strides = [1, 1, 1]} : vector<3x32x8xf32> to vector<1x32x8xf32>
    %86 = vector.shape_cast %85 : vector<1x32x8xf32> to vector<32x8xf32>
    %cst_48 = arith.constant dense<0.000000e+00> : vector<32x16xf32>
    %87 = tpu.matmul %86, %84, %cst_48 {dimension_numbers = #tpu.dot_dimension_numbers<[1], [0], [0], [1], [0, 0, 1, 1], [], []>} : vector<32x8xf32>, vector<8x16xf32>, vector<32x16xf32> -> vector<32x16xf32>
    %88 = arith.addf %82, %87 : vector<32x16xf32>
    %89 = tpu.transpose %88, [1, 0] : vector<32x16xf32> -> vector<16x32xf32>
    %90 = vector.broadcast %4 : vector<1x32xf32> to vector<16x32xf32>
    %91 = arith.addf %89, %90 : vector<16x32xf32>
    %c2_49 = arith.constant 2 : index
    %c0_50 = arith.constant 0 : index
    %c0_51 = arith.constant 0 : index
    %92 = vector.load %arg6[%c2_49, %c0_50, %c0_51] : memref<4x16x32xf32, #tpu.memory_space<vmem>>, vector<1x16x32xf32>
    %93 = vector.shape_cast %92 : vector<1x16x32xf32> to vector<16x32xf32>
    %94 = vector.shape_cast %91 : vector<16x32xf32> to vector<1x16x32xf32>
    tpu.vector_store %arg6[%c2_49, %c0_50, %c0_51], %94 {strides = array<i32>} : memref<4x16x32xf32, #tpu.memory_space<vmem>>, vector<1x16x32xf32>,
    %c3 = arith.constant 3 : index
    %c0_52 = arith.constant 0 : index
    %c0_53 = arith.constant 0 : index
    %95 = vector.load %arg2[%c3, %c0_52, %c0_53] : memref<4x16x16xf32, #tpu.memory_space<vmem>>, vector<1x16x16xf32>
    %96 = vector.shape_cast %95 : vector<1x16x16xf32> to vector<16x16xf32>
    %cst_54 = arith.constant 4.750000e-01 : f32
    %97 = vector.broadcast %cst_54 : f32 to vector<16x16xf32>
    %98 = arith.mulf %97, %96 : vector<16x16xf32>
    %99 = arith.addf %98, %2 : vector<16x16xf32>
    %c3_55 = arith.constant 3 : index
    %c0_56 = arith.constant 0 : index
    %c0_57 = arith.constant 0 : index
    %100 = vector.load %arg1[%c3_55, %c0_56, %c0_57] : memref<4x8x16xf32, #tpu.memory_space<vmem>>, vector<1x8x16xf32>
    %101 = vector.shape_cast %100 : vector<1x8x16xf32> to vector<8x16xf32>
    %cst_58 = arith.constant 5.000000e-02 : f32
    %102 = vector.broadcast %cst_58 : f32 to vector<8x16xf32>
    %103 = arith.mulf %102, %101 : vector<8x16xf32>
    %104 = vector.extract_strided_slice %3 {offsets = [0, 0, 0], sizes = [1, 32, 8], strides = [1, 1, 1]} : vector<3x32x8xf32> to vector<1x32x8xf32>
    %105 = vector.shape_cast %104 : vector<1x32x8xf32> to vector<32x8xf32>
    %cst_59 = arith.constant dense<0.000000e+00> : vector<32x16xf32>
    %106 = tpu.matmul %105, %101, %cst_59 {dimension_numbers = #tpu.dot_dimension_numbers<[1], [0], [0], [1], [0, 0, 1, 1], [], []>} : vector<32x8xf32>, vector<8x16xf32>, vector<32x16xf32> -> vector<32x16xf32>
    %cst_60 = arith.constant dense<0.000000e+00> : vector<8x16xf32>
    %107 = tpu.matmul %101, %99, %cst_60 {dimension_numbers = #tpu.dot_dimension_numbers<[1], [0], [0], [1], [0, 0, 1, 1], [], []>} : vector<8x16xf32>, vector<16x16xf32>, vector<8x16xf32> -> vector<8x16xf32>
    %108 = arith.addf %103, %107 : vector<8x16xf32>
    %109 = vector.extract_strided_slice %3 {offsets = [1, 0, 0], sizes = [1, 32, 8], strides = [1, 1, 1]} : vector<3x32x8xf32> to vector<1x32x8xf32>
    %110 = vector.shape_cast %109 : vector<1x32x8xf32> to vector<32x8xf32>
    %cst_61 = arith.constant dense<0.000000e+00> : vector<32x16xf32>
    %111 = tpu.matmul %110, %108, %cst_61 {dimension_numbers = #tpu.dot_dimension_numbers<[1], [0], [0], [1], [0, 0, 1, 1], [], []>} : vector<32x8xf32>, vector<8x16xf32>, vector<32x16xf32> -> vector<32x16xf32>
    %112 = arith.addf %106, %111 : vector<32x16xf32>
    %cst_62 = arith.constant dense<0.000000e+00> : vector<8x16xf32>
    %113 = tpu.matmul %108, %99, %cst_62 {dimension_numbers = #tpu.dot_dimension_numbers<[1], [0], [0], [1], [0, 0, 1, 1], [], []>} : vector<8x16xf32>, vector<16x16xf32>, vector<8x16xf32> -> vector<8x16xf32>
    %114 = arith.addf %103, %113 : vector<8x16xf32>
    %115 = vector.extract_strided_slice %3 {offsets = [2, 0, 0], sizes = [1, 32, 8], strides = [1, 1, 1]} : vector<3x32x8xf32> to vector<1x32x8xf32>
    %116 = vector.shape_cast %115 : vector<1x32x8xf32> to vector<32x8xf32>
    %cst_63 = arith.constant dense<0.000000e+00> : vector<32x16xf32>
    %117 = tpu.matmul %116, %114, %cst_63 {dimension_numbers = #tpu.dot_dimension_numbers<[1], [0], [0], [1], [0, 0, 1, 1], [], []>} : vector<32x8xf32>, vector<8x16xf32>, vector<32x16xf32> -> vector<32x16xf32>
    %118 = arith.addf %112, %117 : vector<32x16xf32>
    %119 = tpu.transpose %118, [1, 0] : vector<32x16xf32> -> vector<16x32xf32>
    %120 = vector.broadcast %4 : vector<1x32xf32> to vector<16x32xf32>
    %121 = arith.addf %119, %120 : vector<16x32xf32>
    %c3_64 = arith.constant 3 : index
    %c0_65 = arith.constant 0 : index
    %c0_66 = arith.constant 0 : index
    %122 = vector.load %arg6[%c3_64, %c0_65, %c0_66] : memref<4x16x32xf32, #tpu.memory_space<vmem>>, vector<1x16x32xf32>
    %123 = vector.shape_cast %122 : vector<1x16x32xf32> to vector<16x32xf32>
    %124 = vector.shape_cast %121 : vector<16x32xf32> to vector<1x16x32xf32>
    tpu.vector_store %arg6[%c3_64, %c0_65, %c0_66], %124 {strides = array<i32>} : memref<4x16x32xf32, #tpu.memory_space<vmem>>, vector<1x16x32xf32>,
    return
  }
  func.func @transform_0(%arg0: i32) -> (i32, i32, i32) {
    %c0_i32 = arith.constant 0 : i32
    %c0_i32_0 = arith.constant 0 : i32
    %c0_i32_1 = arith.constant 0 : i32
    return %arg0, %c0_i32, %c0_i32_0 : i32, i32, i32
  }
  func.func @transform_1(%arg0: i32) -> (i32, i32, i32) {
    %c0_i32 = arith.constant 0 : i32
    %c0_i32_0 = arith.constant 0 : i32
    %c0_i32_1 = arith.constant 0 : i32
    return %arg0, %c0_i32, %c0_i32_0 : i32, i32, i32
  }
  func.func @transform_2(%arg0: i32) -> (i32, i32) {
    %c0_i32 = arith.constant 0 : i32
    %c0_i32_0 = arith.constant 0 : i32
    %c0_i32_1 = arith.constant 0 : i32
    return %c0_i32, %c0_i32_0 : i32, i32
  }
  func.func @transform_3(%arg0: i32) -> (i32, i32, i32) {
    %c0_i32 = arith.constant 0 : i32
    %c0_i32_0 = arith.constant 0 : i32
    %c0_i32_1 = arith.constant 0 : i32
    %c0_i32_2 = arith.constant 0 : i32
    return %c0_i32, %c0_i32_0, %c0_i32_1 : i32, i32, i32
  }
  func.func @transform_4(%arg0: i32) -> (i32, i32) {
    %c0_i32 = arith.constant 0 : i32
    %c0_i32_0 = arith.constant 0 : i32
    %c0_i32_1 = arith.constant 0 : i32
    return %c0_i32, %c0_i32_0 : i32, i32
  }
  func.func @transform_5(%arg0: i32) -> (i32, i32, i32) {
    %c0_i32 = arith.constant 0 : i32
    %c0_i32_0 = arith.constant 0 : i32
    %c0_i32_1 = arith.constant 0 : i32
    return %arg0, %c0_i32, %c0_i32_0 : i32, i32, i32
  }
}

</mosaic_0001>

<llo_original>
// kernel: tpu_custom_call.1
$region0: #{tpu_custom_call.1}
  #allocation0 [shape = 'u32[]', space=smem, size = 0x4, offset = 0x4, fixed_abs, tag = 'smem constant byte address 0x4 - core index']
  #allocation1 [shape = 'u32[144,128]{1,0:T(1,128)}', space=vmem, size = 0x12000, scoped, tag = 'internal scratch']
  %s0 = inlined_call_operand.vmem [shape: f32[8,8,16], index: 0, kind: input, shape index: {}]
  %s1 = inlined_call_operand.hbm [shape: f32[8,16,16], index: 1, kind: input, shape index: {}]
  %s2 = inlined_call_operand.vmem [shape: f32[16,16], index: 2, kind: input, shape index: {}]
  %s3 = inlined_call_operand.vmem [shape: f32[3,32,8], index: 3, kind: input, shape index: {}]
  %s4 = inlined_call_operand.vmem [shape: f32[1,32], index: 4, kind: input, shape index: {}]
  %s5 = inlined_call_operand.hbm [shape: f32[8,16,32], index: 5, kind: output, shape index: {}]
  %s6 = sld [smem:[#allocation0]]
  $region57: #{tpu_custom_call.1} parent=0
    _
  %s8 = ssub.s32 1, %s6
  %s9 = scalar_select 0, %s8, %s6
  $region1: #{tpu_custom_call.1} parent=0
    #allocation2 [shape = 'u8[65536]{0}', space=vmem, size = 0x10000, scoped, tag = 'input window, operand 1']
    #allocation3 [shape = 's32[2]{0}', space=sflag, size = 0x8, scoped, tag = 'scoped memory for tpu_custom_call.1']
    #allocation4 [shape = 's32[2]{0}', space=sflag, size = 0x8, scoped, tag = 'scoped memory for tpu_custom_call.1']
    #allocation5 [shape = 'u8[65536]{0}', space=vmem, size = 0x10000, scoped, tag = 'output window, operand 0']
    %10 = vsyncpa [#allocation3], 0
    %s11 = scalar_lea.sflag [#allocation3], 1
    %12 = vsyncpa %s11, 0
    %13 = vsyncpa [#allocation4], 0
    %s14 = scalar_lea.sflag [#allocation4], 1
    %15 = vsyncpa %s14, 0
    loop: start=0, step=1, limit=4
    $region2: #{tpu_custom_call.1} parent=1 // loop_pre_header
      _
    $region3: #{tpu_custom_call.1} parent=1 // loop_header
      %s17 = sphi 0, %s21
      %p18 = scmp.ge.s32.totalorder %s17, 4
      %s27 = sphi 0, %s29
      %s30 = sphi 0, %s27
      %s31 = sphi 0, %s30
      %s47 = sphi 0, %s31
      %s53 = sphi 0, %s55
      %s56 = sphi 0, %s53
      %s57 = sphi 0, %s56
      %s73 = sphi 0, %s57
      %s77 = sphi 0, %s77
      %s79 = sphi 0, %s77
      %s80 = sphi 0, %s79
      %s94 = sphi 0, %s80
      %s98 = sphi 0, %s98
      %s100 = sphi 0, %s98
      %s101 = sphi 0, %s100
      %s115 = sphi 0, %s101
      %s119 = sphi 0, %s119
      %s121 = sphi 0, %s119
      %s122 = sphi 0, %s121
      %s136 = sphi 0, %s122
      %s142 = sphi 0, %s144
      %s145 = sphi 0, %s142
      %s146 = sphi 0, %s145
      %s162 = sphi 0, %s146
    $region4: #{tpu_custom_call.1} parent=1 // loop_header_branch
      %20 = sbr.rel (%p18) target = $region8
    $region5: #{tpu_custom_call.1} parent=1 // loop_body
      %s22 = ssub.s32 %s17, 1
      %s23 = ssub.s32 %s17, 2
      %s24 = sadd.s32 %s17, 1
      %s25 = ssub.s32 %s17, %s24
      %p26 = scmp.eq.s32.totalorder %s25, 0
      %s28 = sadd.s32 %s27, 1
      %s29 = scalar_select %p26, %s27, %s28
      %p32 = pneg %p26
      %p33 = scmp.eq.s32.totalorder %s17, 1
      %p34 = por %p32, %p33
      %p35 = scmp.ne.s32.totalorder %s27, %s30
      %p36 = scmp.eq.s32.totalorder %s17, 0
      %p37 = por %p35, %p36
      %p38 = scmp.ne.s32.totalorder %s27, %s30
      %p39 = scmp.eq.s32.totalorder %s22, 1
      %p40 = por %p38, %p39
      %p41 = scmp.ne.s32.totalorder %s30, %s31
      %p42 = scmp.eq.s32.totalorder %s22, 0
      %p43 = por %p41, %p42
      %p44 = scmp.ne.s32.totalorder %s30, %s31
      %p45 = scmp.eq.s32.totalorder %s23, 1
      %p46 = por %p44, %p45
      %p48 = scmp.ne.s32.totalorder %s31, %s47
      %p49 = scmp.eq.s32.totalorder %s23, 0
      %p50 = por %p48, %p49
      %s51 = ssub.s32 %s17, %s24
      %p52 = scmp.eq.s32.totalorder %s51, 0
      %s54 = sadd.s32 %s53, 1
      %s55 = scalar_select %p52, %s53, %s54
      %p58 = pneg %p52
      %p59 = scmp.eq.s32.totalorder %s17, 1
      %p60 = por %p58, %p59
      %p61 = scmp.ne.s32.totalorder %s53, %s56
      %p62 = scmp.eq.s32.totalorder %s17, 0
      %p63 = por %p61, %p62
      %p64 = scmp.ne.s32.totalorder %s53, %s56
      %p65 = scmp.eq.s32.totalorder %s22, 1
      %p66 = por %p64, %p65
      %p67 = scmp.ne.s32.totalorder %s56, %s57
      %p68 = scmp.eq.s32.totalorder %s22, 0
      %p69 = por %p67, %p68
      %p70 = scmp.ne.s32.totalorder %s56, %s57
      %p71 = scmp.eq.s32.totalorder %s23, 1
      %p72 = por %p70, %p71
      %p74 = scmp.ne.s32.totalorder %s57, %s73
      %p75 = scmp.eq.s32.totalorder %s23, 0
      %p76 = por %p74, %p75
      %s78 = sadd.s32 %s77, 1
      %p81 = scmp.eq.s32.totalorder %s17, 1
      %p82 = scmp.ne.s32.totalorder %s77, %s79
      %p83 = scmp.eq.s32.totalorder %s17, 0
      %p84 = por %p82, %p83
      %p85 = scmp.ne.s32.totalorder %s77, %s79
      %p86 = scmp.eq.s32.totalorder %s22, 1
      %p87 = por %p85, %p86
      %p88 = scmp.ne.s32.totalorder %s79, %s80
      %p89 = scmp.eq.s32.totalorder %s22, 0
      %p90 = por %p88, %p89
      %p91 = scmp.ne.s32.totalorder %s79, %s80
      %p92 = scmp.eq.s32.totalorder %s23, 1
      %p93 = por %p91, %p92
      %p95 = scmp.ne.s32.totalorder %s80, %s94
      %p96 = scmp.eq.s32.totalorder %s23, 0
      %p97 = por %p95, %p96
      %s99 = sadd.s32 %s98, 1
      %p102 = scmp.eq.s32.totalorder %s17, 1
      %p103 = scmp.ne.s32.totalorder %s98, %s100
      %p104 = scmp.eq.s32.totalorder %s17, 0
      %p105 = por %p103, %p104
      %p106 = scmp.ne.s32.totalorder %s98, %s100
      %p107 = scmp.eq.s32.totalorder %s22, 1
      %p108 = por %p106, %p107
      %p109 = scmp.ne.s32.totalorder %s100, %s101
      %p110 = scmp.eq.s32.totalorder %s22, 0
      %p111 = por %p109, %p110
      %p112 = scmp.ne.s32.totalorder %s100, %s101
      %p113 = scmp.eq.s32.totalorder %s23, 1
      %p114 = por %p112, %p113
      %p116 = scmp.ne.s32.totalorder %s101, %s115
      %p117 = scmp.eq.s32.totalorder %s23, 0
      %p118 = por %p116, %p117
      %s120 = sadd.s32 %s119, 1
      %p123 = scmp.eq.s32.totalorder %s17, 1
      %p124 = scmp.ne.s32.totalorder %s119, %s121
      %p125 = scmp.eq.s32.totalorder %s17, 0
      %p126 = por %p124, %p125
      %p127 = scmp.ne.s32.totalorder %s119, %s121
      %p128 = scmp.eq.s32.totalorder %s22, 1
      %p129 = por %p127, %p128
      %p130 = scmp.ne.s32.totalorder %s121, %s122
      %p131 = scmp.eq.s32.totalorder %s22, 0
      %p132 = por %p130, %p131
      %p133 = scmp.ne.s32.totalorder %s121, %s122
      %p134 = scmp.eq.s32.totalorder %s23, 1
      %p135 = por %p133, %p134
      %p137 = scmp.ne.s32.totalorder %s122, %s136
      %p138 = scmp.eq.s32.totalorder %s23, 0
      %p139 = por %p137, %p138
      %s140 = ssub.s32 %s17, %s24
      %p141 = scmp.eq.s32.totalorder %s140, 0
      %s143 = sadd.s32 %s142, 1
      %s144 = scalar_select %p141, %s142, %s143
      %p147 = pneg %p141
      %p148 = scmp.eq.s32.totalorder %s17, 1
      %p149 = por %p147, %p148
      %p150 = scmp.ne.s32.totalorder %s142, %s145
      %p151 = scmp.eq.s32.totalorder %s17, 0
      %p152 = por %p150, %p151
      %p153 = scmp.ne.s32.totalorder %s142, %s145
      %p154 = scmp.eq.s32.totalorder %s22, 1
      %p155 = por %p153, %p154
      %p156 = scmp.ne.s32.totalorder %s145, %s146
      %p157 = scmp.eq.s32.totalorder %s22, 0
      %p158 = por %p156, %p157
      %p159 = scmp.ne.s32.totalorder %s145, %s146
      %p160 = scmp.eq.s32.totalorder %s23, 1
      %p161 = por %p159, %p160
      %p163 = scmp.ne.s32.totalorder %s146, %s162
      %p164 = scmp.eq.s32.totalorder %s23, 0
      %p165 = por %p163, %p164
      %p166 = scmp.le.s32.totalorder 1, %s17
      %p167 = scmp.lt.s32.totalorder %s17, 3
      %p168 = pnand %p166, %p167
      %p169 = pneg %p168
      // Predicated region
      $region9: #{tpu_custom_call.1} parent=5 // pred_check
        _
      $region10: #{tpu_custom_call.1} parent=5 // pred_check_branch
        %171 = sbr.rel (%p168) target = $region12
      $region11: #{tpu_custom_call.1} parent=5 // pred_region
        %s172 = ssub.s32 %s17, 1
        // Predicated region
        $region13: #{tpu_custom_call.1} parent=11 // pred_check
          %p173 = pneg %p90
        $region14: #{tpu_custom_call.1} parent=11 // pred_check_branch
          %175 = sbr.rel (%p173) target = $region16
        $region15: #{tpu_custom_call.1} parent=11 // pred_region
          _
        $region16: #{tpu_custom_call.1} parent=11 // pred_fallthru
          _
        // Predicated region
        $region17: #{tpu_custom_call.1} parent=11 // pred_check
          %p176 = pneg %p111
        $region18: #{tpu_custom_call.1} parent=11 // pred_check_branch
          %178 = sbr.rel (%p176) target = $region20
        $region19: #{tpu_custom_call.1} parent=11 // pred_region
          _
        $region20: #{tpu_custom_call.1} parent=11 // pred_fallthru
          _
        // Predicated region
        $region21: #{tpu_custom_call.1} parent=11 // pred_check
          %p179 = pneg %p132
        $region22: #{tpu_custom_call.1} parent=11 // pred_check_branch
          %181 = sbr.rel (%p179) target = $region24
        $region23: #{tpu_custom_call.1} parent=11 // pred_region
          _
        $region24: #{tpu_custom_call.1} parent=11 // pred_fallthru
          _
      $region12: #{tpu_custom_call.1} parent=5 // pred_fallthru
        _
      %p182 = scmp.lt.s32.totalorder %s17, 2
      // Predicated region
      $region25: #{tpu_custom_call.1} parent=5 // pred_check
        %p183 = pneg %p182
      $region26: #{tpu_custom_call.1} parent=5 // pred_check_branch
        %185 = sbr.rel (%p183) target = $region28
      $region27: #{tpu_custom_call.1} parent=5 // pred_region
        // Predicated region
        $region29: #{tpu_custom_call.1} parent=27 // pred_check
          %p186 = pneg %p37
        $region30: #{tpu_custom_call.1} parent=27 // pred_check_branch
          %188 = sbr.rel (%p186) target = $region32
        $region31: #{tpu_custom_call.1} parent=27 // pred_region
          %s189 = smul.u32 4, %s17
          %p190 = scmp.lt.s32.totalorder %s189, 7
          %s191 = scalar_select %p190, %s189, 7
          %s192 = smul.addr %s191, 8
          %s193 = scalar_lea.vmem %s0, %s192
          %s194 = smul.u32 4, %s17
        $region32: #{tpu_custom_call.1} parent=27 // pred_fallthru
          _
        // Predicated region
        $region33: #{tpu_custom_call.1} parent=27 // pred_check
          %p195 = pneg %p63
        $region34: #{tpu_custom_call.1} parent=27 // pred_check_branch
          %197 = sbr.rel (%p195) target = $region36
        $region35: #{tpu_custom_call.1} parent=27 // pred_region
          %s198 = sand.u32 %s53, 1
          %s199 = scalar_lea.sflag [#allocation3], %s198
          %s200 = sand.u32 %s53, 1
          %s201 = smul.addr %s200, 64
          %s202 = scalar_lea.vmem [#allocation2], %s201
          %s203 = smul.u32 4, %s17
          %s205 = ssub.s32 1024, 1024
          %206 = vsyncadd %s199, %s205
          %s207 = smul.addr %s203, 2
          %s208 = smul.addr %s207, 128
          %s209 = scalar_lea.hbm %s1, %s208
          %s210 = sshll.u32 %s202, 4
          %s211 = int_to_ptr.vmem [resolvable:$true] %s210
          %216 = dma.hbm_to_vmem [thread:$0]  %s209, 1024, %s211, %s199, 128, 128, 8
        $region36: #{tpu_custom_call.1} parent=27 // pred_fallthru
          _
      $region28: #{tpu_custom_call.1} parent=5 // pred_fallthru
        _
      %p217 = scmp.le.s32.totalorder 1, %s17
      %p218 = scmp.lt.s32.totalorder %s17, 3
      %p219 = pnand %p217, %p218
      %p220 = pneg %p219
      // Predicated region
      $region37: #{tpu_custom_call.1} parent=5 // pred_check
        _
      $region38: #{tpu_custom_call.1} parent=5 // pred_check_branch
        %222 = sbr.rel (%p219) target = $region40
      $region39: #{tpu_custom_call.1} parent=5 // pred_region
        %s223 = ssub.s32 %s17, 1
        %s224 = sand.u32 %s56, 1
        %s225 = scalar_lea.sflag [#allocation3], %s224
        %s226 = sand.u32 %s56, 1
        %s227 = smul.addr %s226, 64
        %s228 = scalar_lea.vmem [#allocation2], %s227
        // Predicated region
        $region41: #{tpu_custom_call.1} parent=39 // pred_check
          %p229 = pneg %p69
        $region42: #{tpu_custom_call.1} parent=39 // pred_check_branch
          %231 = sbr.rel (%p229) target = $region44
        $region43: #{tpu_custom_call.1} parent=39 // pred_region
          %232 = dma.done %s225, 1024
        $region44: #{tpu_custom_call.1} parent=39 // pred_fallthru
          _
        %s233 = smul.u32 4, %s22
        %p234 = scmp.lt.s32.totalorder %s233, 7
        %s235 = scalar_select %p234, %s233, 7
        %s236 = smul.addr %s235, 8
        %s237 = scalar_lea.vmem %s0, %s236
        %p238 = pneg %p43
        %p239 = pneg %p40
        %s240 = sand.u32 %s56, 1
        %s241 = scalar_lea.sflag [#allocation3], %s240
        %s242 = sand.u32 %s56, 1
        %s243 = smul.addr %s242, 64
        %s244 = scalar_lea.vmem [#allocation2], %s243
        %p245 = pneg %p69
        %p246 = pneg %p66
        %p247 = pneg %p90
        %p248 = pneg %p87
        %p249 = pneg %p111
        %p250 = pneg %p108
        %p251 = pneg %p132
        %p252 = pneg %p129
        %p253 = pneg %p158
        %p254 = pneg %p155
        %s255 = sand.u32 %s145, 1
        %s256 = scalar_lea.sflag [#allocation4], %s255
        %s257 = sand.u32 %s145, 1
        %s258 = smul.addr %s257, 64
        %s259 = scalar_lea.vmem [#allocation5], %s258
        %s260 = smul.u32 4, %s22
        %p261 = scmp.lt.s32.totalorder %s260, 7
        %s262 = scalar_select %p261, %s260, 7
        %s263 = smul.addr %s262, 8
        %s264 = scalar_lea.vmem %s0, %s263
        %s265 = smul.u32 4, %s22
        %s266 = smul.u32 4, %s22
        %s267 = smul.u32 4, %s22
        %v268 = vld [vmem:[%s2] sm:$0xff]
        %v269 = vld [vmem:[%s2 + $0x8] sm:$0xff]
        %v270 = vmul.f32 %v268, 0.475
        %v271 = vmul.f32 %v269, 0.475
        %v272 = vld [vmem:[%s3] sm:$0xff]
        %v273 = vld [vmem:[%s3 + $0x8] sm:$0xff]
        %v274 = vld [vmem:[%s3 + $0x10] sm:$0xff]
        %v275 = vld [vmem:[%s3 + $0x18] sm:$0xff]
        %v276 = vld [vmem:[%s3 + $0x20] sm:$0xff]
        %v277 = vld [vmem:[%s3 + $0x28] sm:$0xff]
        %v278 = vld [vmem:[%s3 + $0x30] sm:$0xff]
        %v279 = vld [vmem:[%s3 + $0x38] sm:$0xff]
        %v280 = vld [vmem:[%s3 + $0x40] sm:$0xff]
        %v281 = vld [vmem:[%s3 + $0x48] sm:$0xff]
        %v282 = vld [vmem:[%s3 + $0x50] sm:$0xff]
        %v283 = vld [vmem:[%s3 + $0x58] sm:$0xff]
        %v284 = vld [vmem:[%s4] sm:$0x1]
        %v285 = vld [vmem:[%s228] sm:$0xff]
        %v286 = vld [vmem:[%s228 + $0x8] sm:$0xff]
        %v287 = vmul.f32 %v285, 0.475
        %v288 = vmul.f32 %v286, 0.475
        %v289 = vadd.f32 %v287, %v270
        %v290 = vadd.f32 %v288, %v271
        %v291 = vld [vmem:[%s264] sm:$0xff]
        %v292 = vmul.f32 %v291, 0.05
        %vm293 = vcmask 130048
        %v295 = vsel %vm293, %v291, 0
        %297 = vmatprep.subr.mxu0 0.0
        %298 = vmatpush1.msra.mxu0 %v289
        %299 = vmatprep.subr.mxu0 0.0
        %300 = vmatpush1.msra.mxu0 %v290
        %301 = vmatprep.subr.mxu0 0.0
        %302 = vmatpush1.msra.mxu0 0.0
        %303 = vmatprep.subr.mxu0 0.0
        %304 = vmatpush1.msra.mxu0 0.0
        %305 = vmatprep.subr.mxu0 0.0
        %306 = vmatpush1.msra.mxu0 0.0
        %307 = vmatprep.subr.mxu0 0.0
        %308 = vmatpush1.msra.mxu0 0.0
        %309 = vmatprep.subr.mxu0 0.0
        %310 = vmatpush1.msra.mxu0 0.0
        %311 = vmatprep.subr.mxu0 0.0
        %312 = vmatpush1.msra.mxu0 0.0
        %313 = vmatprep.subr.mxu0 0.0
        %314 = vmatpush1.msra.mxu0 0.0
        %315 = vmatprep.subr.mxu0 0.0
        %316 = vmatpush1.msra.mxu0 0.0
        %317 = vmatprep.subr.mxu0 0.0
        %318 = vmatpush1.msra.mxu0 0.0
        %319 = vmatprep.subr.mxu0 0.0
        %320 = vmatpush1.msra.mxu0 0.0
        %321 = vmatprep.subr.mxu0 0.0
        %322 = vmatpush1.msra.mxu0 0.0
        %323 = vmatprep.subr.mxu0 0.0
        %324 = vmatpush1.msra.mxu0 0.0
        %325 = vmatprep.subr.mxu0 0.0
        %326 = vmatpush1.msra.mxu0 0.0
        %327 = vmatprep.subr.mxu0 0.0
        %328 = vmatpush1.msra.mxu0 0.0
        %329 = vmatprep.subr.mxu0 0.0
        %330 = vmatpush1.msra.mxu0 0.0
        %331 = vmatprep.subr.mxu0 0.0
        %332 = vmatpush1.msra.mxu0 0.0
        %333 = vmatprep.subr.mxu0 0.0
        %334 = vmatpush1.msra.mxu0 0.0
        %335 = vmatprep.subr.mxu0 0.0
        %336 = vmatpush1.msra.mxu0 0.0
        %337 = vmatprep.subr.mxu0 0.0
        %338 = vmatpush1.msra.mxu0 0.0
        %339 = vmatprep.subr.mxu0 0.0
        %340 = vmatpush1.msra.mxu0 0.0
        %341 = vmatprep.subr.mxu0 0.0
        %342 = vmatpush1.msra.mxu0 0.0
        %343 = vmatprep.subr.mxu0 0.0
        %344 = vmatpush1.msra.mxu0 0.0
        %345 = vmatprep.subr.mxu0 0.0
        %346 = vmatpush1.msra.mxu0 0.0
        %347 = vmatprep.subr.mxu0 0.0
        %348 = vmatpush1.msra.mxu0 0.0
        %349 = vmatprep.subr.mxu0 0.0
        %350 = vmatpush1.msra.mxu0 0.0
        %351 = vmatprep.subr.mxu0 0.0
        %352 = vmatpush1.msra.mxu0 0.0
        %353 = vmatprep.subr.mxu0 0.0
        %354 = vmatpush1.msra.mxu0 0.0
        %355 = vmatprep.subr.mxu0 0.0
        %356 = vmatpush1.msra.mxu0 0.0
        %357 = vmatprep.subr.mxu0 0.0
        %358 = vmatpush1.msra.mxu0 0.0
        %359 = vmatprep.subr.mxu0 0.0
        %360 = vmatpush1.msra.mxu0 0.0
        %361 = vmatprep.mubr.f32.mxu0 0.0
        %362 = vmatmul.mubr.f32.gmra.mrb[0].mxu0 %v295
        %v363 = vpop.f32.mrb[0].mxu0
        %v364 = vadd.f32 0.0, %v363
        %v365 = vpop.f32.mrb[0].mxu0
        %366 = vdwg.mxu0
        %v367 = vadd.f32 %v292, %v364
        %vm368 = vcmask 64512
        %v370 = vsel %vm368, %v276, 0
        %v373 = vsel %vm368, %v277, 0
        %v376 = vsel %vm368, %v278, 0
        %v379 = vsel %vm368, %v279, 0
        %381 = vmatprep.subr.mxu0 0.0
        %382 = vmatpush1.msra.mxu0 %v367
        %383 = vmatprep.subr.mxu0 0.0
        %384 = vmatpush1.msra.mxu0 0.0
        %385 = vmatprep.subr.mxu0 0.0
        %386 = vmatpush1.msra.mxu0 0.0
        %387 = vmatprep.subr.mxu0 0.0
        %388 = vmatpush1.msra.mxu0 0.0
        %389 = vmatprep.subr.mxu0 0.0
        %390 = vmatpush1.msra.mxu0 0.0
        %391 = vmatprep.subr.mxu0 0.0
        %392 = vmatpush1.msra.mxu0 0.0
        %393 = vmatprep.subr.mxu0 0.0
        %394 = vmatpush1.msra.mxu0 0.0
        %395 = vmatprep.subr.mxu0 0.0
        %396 = vmatpush1.msra.mxu0 0.0
        %397 = vmatprep.subr.mxu0 0.0
        %398 = vmatpush1.msra.mxu0 0.0
        %399 = vmatprep.subr.mxu0 0.0
        %400 = vmatpush1.msra.mxu0 0.0
        %401 = vmatprep.subr.mxu0 0.0
        %402 = vmatpush1.msra.mxu0 0.0
        %403 = vmatprep.subr.mxu0 0.0
        %404 = vmatpush1.msra.mxu0 0.0
        %405 = vmatprep.subr.mxu0 0.0
        %406 = vmatpush1.msra.mxu0 0.0
        %407 = vmatprep.subr.mxu0 0.0
        %408 = vmatpush1.msra.mxu0 0.0
        %409 = vmatprep.subr.mxu0 0.0
        %410 = vmatpush1.msra.mxu0 0.0
        %411 = vmatprep.subr.mxu0 0.0
        %412 = vmatpush1.msra.mxu0 0.0
        %413 = vmatprep.subr.mxu0 0.0
        %414 = vmatpush1.msra.mxu0 0.0
        %415 = vmatprep.subr.mxu0 0.0
        %416 = vmatpush1.msra.mxu0 0.0
        %417 = vmatprep.subr.mxu0 0.0
        %418 = vmatpush1.msra.mxu0 0.0
        %419 = vmatprep.subr.mxu0 0.0
        %420 = vmatpush1.msra.mxu0 0.0
        %421 = vmatprep.subr.mxu0 0.0
        %422 = vmatpush1.msra.mxu0 0.0
        %423 = vmatprep.subr.mxu0 0.0
        %424 = vmatpush1.msra.mxu0 0.0
        %425 = vmatprep.subr.mxu0 0.0
        %426 = vmatpush1.msra.mxu0 0.0
        %427 = vmatprep.subr.mxu0 0.0
        %428 = vmatpush1.msra.mxu0 0.0
        %429 = vmatprep.subr.mxu0 0.0
        %430 = vmatpush1.msra.mxu0 0.0
        %431 = vmatprep.subr.mxu0 0.0
        %432 = vmatpush1.msra.mxu0 0.0
        %433 = vmatprep.subr.mxu0 0.0
        %434 = vmatpush1.msra.mxu0 0.0
        %435 = vmatprep.subr.mxu0 0.0
        %436 = vmatpush1.msra.mxu0 0.0
        %437 = vmatprep.subr.mxu0 0.0
        %438 = vmatpush1.msra.mxu0 0.0
        %439 = vmatprep.subr.mxu0 0.0
        %440 = vmatpush1.msra.mxu0 0.0
        %441 = vmatprep.subr.mxu0 0.0
        %442 = vmatpush1.msra.mxu0 0.0
        %443 = vmatprep.subr.mxu0 0.0
        %444 = vmatpush1.msra.mxu0 0.0
        %445 = vmatprep.mubr.f32.mxu0 0.0
        %446 = vmatmul.mubr.f32.gmra.mrb[0].mxu0 %v370
        %v447 = vpop.f32.mrb[0].mxu0
        %v448 = vadd.f32 0.0, %v447
        %v449 = vpop.f32.mrb[0].mxu0
        %450 = vmatprep.mubr.f32.mxu0 0.0
        %451 = vmatmul.mubr.f32.gmra.mrb[0].mxu0 %v373
        %v452 = vpop.f32.mrb[0].mxu0
        %v453 = vadd.f32 0.0, %v452
        %v454 = vpop.f32.mrb[0].mxu0
        %455 = vmatprep.mubr.f32.mxu0 0.0
        %456 = vmatmul.mubr.f32.gmra.mrb[0].mxu0 %v376
        %v457 = vpop.f32.mrb[0].mxu0
        %v458 = vadd.f32 0.0, %v457
        %v459 = vpop.f32.mrb[0].mxu0
        %460 = vmatprep.mubr.f32.mxu0 0.0
        %461 = vmatmul.mubr.f32.gmra.mrb[0].mxu0 %v379
        %v462 = vpop.f32.mrb[0].mxu0
        %v463 = vadd.f32 0.0, %v462
        %v464 = vpop.f32.mrb[0].mxu0
        %465 = vdwg.mxu0
        %v467 = vsel %vm368, %v272, 0
        %v470 = vsel %vm368, %v273, 0
        %v473 = vsel %vm368, %v274, 0
        %v476 = vsel %vm368, %v275, 0
        %478 = vmatprep.subr.mxu0 0.0
        %479 = vmatpush1.msra.mxu0 %v291
        %480 = vmatprep.subr.mxu0 0.0
        %481 = vmatpush1.msra.mxu0 0.0
        %482 = vmatprep.subr.mxu0 0.0
        %483 = vmatpush1.msra.mxu0 0.0
        %484 = vmatprep.subr.mxu0 0.0
        %485 = vmatpush1.msra.mxu0 0.0
        %486 = vmatprep.subr.mxu0 0.0
        %487 = vmatpush1.msra.mxu0 0.0
        %488 = vmatprep.subr.mxu0 0.0
        %489 = vmatpush1.msra.mxu0 0.0
        %490 = vmatprep.subr.mxu0 0.0
        %491 = vmatpush1.msra.mxu0 0.0
        %492 = vmatprep.subr.mxu0 0.0
        %493 = vmatpush1.msra.mxu0 0.0
        %494 = vmatprep.subr.mxu0 0.0
        %495 = vmatpush1.msra.mxu0 0.0
        %496 = vmatprep.subr.mxu0 0.0
        %497 = vmatpush1.msra.mxu0 0.0
        %498 = vmatprep.subr.mxu0 0.0
        %499 = vmatpush1.msra.mxu0 0.0
        %500 = vmatprep.subr.mxu0 0.0
        %501 = vmatpush1.msra.mxu0 0.0
        %502 = vmatprep.subr.mxu0 0.0
        %503 = vmatpush1.msra.mxu0 0.0
        %504 = vmatprep.subr.mxu0 0.0
        %505 = vmatpush1.msra.mxu0 0.0
        %506 = vmatprep.subr.mxu0 0.0
        %507 = vmatpush1.msra.mxu0 0.0
        %508 = vmatprep.subr.mxu0 0.0
        %509 = vmatpush1.msra.mxu0 0.0
        %510 = vmatprep.subr.mxu0 0.0
        %511 = vmatpush1.msra.mxu0 0.0
        %512 = vmatprep.subr.mxu0 0.0
        %513 = vmatpush1.msra.mxu0 0.0
        %514 = vmatprep.subr.mxu0 0.0
        %515 = vmatpush1.msra.mxu0 0.0
        %516 = vmatprep.subr.mxu0 0.0
        %517 = vmatpush1.msra.mxu0 0.0
        %518 = vmatprep.subr.mxu0 0.0
        %519 = vmatpush1.msra.mxu0 0.0
        %520 = vmatprep.subr.mxu0 0.0
        %521 = vmatpush1.msra.mxu0 0.0
        %522 = vmatprep.subr.mxu0 0.0
        %523 = vmatpush1.msra.mxu0 0.0
        %524 = vmatprep.subr.mxu0 0.0
        %525 = vmatpush1.msra.mxu0 0.0
        %526 = vmatprep.subr.mxu0 0.0
        %527 = vmatpush1.msra.mxu0 0.0
        %528 = vmatprep.subr.mxu0 0.0
        %529 = vmatpush1.msra.mxu0 0.0
        %530 = vmatprep.subr.mxu0 0.0
        %531 = vmatpush1.msra.mxu0 0.0
        %532 = vmatprep.subr.mxu0 0.0
        %533 = vmatpush1.msra.mxu0 0.0
        %534 = vmatprep.subr.mxu0 0.0
        %535 = vmatpush1.msra.mxu0 0.0
        %536 = vmatprep.subr.mxu0 0.0
        %537 = vmatpush1.msra.mxu0 0.0
        %538 = vmatprep.subr.mxu0 0.0
        %539 = vmatpush1.msra.mxu0 0.0
        %540 = vmatprep.subr.mxu0 0.0
        %541 = vmatpush1.msra.mxu0 0.0
        %542 = vmatprep.mubr.f32.mxu0 0.0
        %543 = vmatmul.mubr.f32.gmra.mrb[0].mxu0 %v467
        %v544 = vpop.f32.mrb[0].mxu0
        %v545 = vadd.f32 %v448, %v544
        %v546 = vpop.f32.mrb[0].mxu0
        %547 = vmatprep.mubr.f32.mxu0 0.0
        %548 = vmatmul.mubr.f32.gmra.mrb[0].mxu0 %v470
        %v549 = vpop.f32.mrb[0].mxu0
        %v550 = vadd.f32 %v453, %v549
        %v551 = vpop.f32.mrb[0].mxu0
        %552 = vmatprep.mubr.f32.mxu0 0.0
        %553 = vmatmul.mubr.f32.gmra.mrb[0].mxu0 %v473
        %v554 = vpop.f32.mrb[0].mxu0
        %v555 = vadd.f32 %v458, %v554
        %v556 = vpop.f32.mrb[0].mxu0
        %557 = vmatprep.mubr.f32.mxu0 0.0
        %558 = vmatmul.mubr.f32.gmra.mrb[0].mxu0 %v476
        %v559 = vpop.f32.mrb[0].mxu0
        %v560 = vadd.f32 %v463, %v559
        %v561 = vpop.f32.mrb[0].mxu0
        %562 = vdwg.mxu0
        %v564 = vsel %vm293, %v367, 0
        %566 = vmatprep.subr.mxu0 0.0
        %567 = vmatpush1.msra.mxu0 %v289
        %568 = vmatprep.subr.mxu0 0.0
        %569 = vmatpush1.msra.mxu0 %v290
        %570 = vmatprep.subr.mxu0 0.0
        %571 = vmatpush1.msra.mxu0 0.0
        %572 = vmatprep.subr.mxu0 0.0
        %573 = vmatpush1.msra.mxu0 0.0
        %574 = vmatprep.subr.mxu0 0.0
        %575 = vmatpush1.msra.mxu0 0.0
        %576 = vmatprep.subr.mxu0 0.0
        %577 = vmatpush1.msra.mxu0 0.0
        %578 = vmatprep.subr.mxu0 0.0
        %579 = vmatpush1.msra.mxu0 0.0
        %580 = vmatprep.subr.mxu0 0.0
        %581 = vmatpush1.msra.mxu0 0.0
        %582 = vmatprep.subr.mxu0 0.0
        %583 = vmatpush1.msra.mxu0 0.0
        %584 = vmatprep.subr.mxu0 0.0
        %585 = vmatpush1.msra.mxu0 0.0
        %586 = vmatprep.subr.mxu0 0.0
        %587 = vmatpush1.msra.mxu0 0.0
        %588 = vmatprep.subr.mxu0 0.0
        %589 = vmatpush1.msra.mxu0 0.0
        %590 = vmatprep.subr.mxu0 0.0
        %591 = vmatpush1.msra.mxu0 0.0
        %592 = vmatprep.subr.mxu0 0.0
        %593 = vmatpush1.msra.mxu0 0.0
        %594 = vmatprep.subr.mxu0 0.0
        %595 = vmatpush1.msra.mxu0 0.0
        %596 = vmatprep.subr.mxu0 0.0
        %597 = vmatpush1.msra.mxu0 0.0
        %598 = vmatprep.subr.mxu0 0.0
        %599 = vmatpush1.msra.mxu0 0.0
        %600 = vmatprep.subr.mxu0 0.0
        %601 = vmatpush1.msra.mxu0 0.0
        %602 = vmatprep.subr.mxu0 0.0
        %603 = vmatpush1.msra.mxu0 0.0
        %604 = vmatprep.subr.mxu0 0.0
        %605 = vmatpush1.msra.mxu0 0.0
        %606 = vmatprep.subr.mxu0 0.0
        %607 = vmatpush1.msra.mxu0 0.0
        %608 = vmatprep.subr.mxu0 0.0
        %609 = vmatpush1.msra.mxu0 0.0
        %610 = vmatprep.subr.mxu0 0.0
        %611 = vmatpush1.msra.mxu0 0.0
        %612 = vmatprep.subr.mxu0 0.0
        %613 = vmatpush1.msra.mxu0 0.0
        %614 = vmatprep.subr.mxu0 0.0
        %615 = vmatpush1.msra.mxu0 0.0
        %616 = vmatprep.subr.mxu0 0.0
        %617 = vmatpush1.msra.mxu0 0.0
        %618 = vmatprep.subr.mxu0 0.0
        %619 = vmatpush1.msra.mxu0 0.0
        %620 = vmatprep.subr.mxu0 0.0
        %621 = vmatpush1.msra.mxu0 0.0
        %622 = vmatprep.subr.mxu0 0.0
        %623 = vmatpush1.msra.mxu0 0.0
        %624 = vmatprep.subr.mxu0 0.0
        %625 = vmatpush1.msra.mxu0 0.0
        %626 = vmatprep.subr.mxu0 0.0
        %627 = vmatpush1.msra.mxu0 0.0
        %628 = vmatprep.subr.mxu0 0.0
        %629 = vmatpush1.msra.mxu0 0.0
        %630 = vmatprep.mubr.f32.mxu0 0.0
        %631 = vmatmul.mubr.f32.gmra.mrb[0].mxu0 %v564
        %v632 = vpop.f32.mrb[0].mxu0
        %v633 = vadd.f32 0.0, %v632
        %v634 = vpop.f32.mrb[0].mxu0
        %635 = vdwg.mxu0
        %v636 = vadd.f32 %v292, %v633
        %v638 = vsel %vm368, %v280, 0
        %v641 = vsel %vm368, %v281, 0
        %v644 = vsel %vm368, %v282, 0
        %v647 = vsel %vm368, %v283, 0
        %649 = vmatprep.subr.mxu0 0.0
        %650 = vmatpush1.msra.mxu0 %v636
        %651 = vmatprep.subr.mxu0 0.0
        %652 = vmatpush1.msra.mxu0 0.0
        %653 = vmatprep.subr.mxu0 0.0
        %654 = vmatpush1.msra.mxu0 0.0
        %655 = vmatprep.subr.mxu0 0.0
        %656 = vmatpush1.msra.mxu0 0.0
        %657 = vmatprep.subr.mxu0 0.0
        %658 = vmatpush1.msra.mxu0 0.0
        %659 = vmatprep.subr.mxu0 0.0
        %660 = vmatpush1.msra.mxu0 0.0
        %661 = vmatprep.subr.mxu0 0.0
        %662 = vmatpush1.msra.mxu0 0.0
        %663 = vmatprep.subr.mxu0 0.0
        %664 = vmatpush1.msra.mxu0 0.0
        %665 = vmatprep.subr.mxu0 0.0
        %666 = vmatpush1.msra.mxu0 0.0
        %667 = vmatprep.subr.mxu0 0.0
        %668 = vmatpush1.msra.mxu0 0.0
        %669 = vmatprep.subr.mxu0 0.0
        %670 = vmatpush1.msra.mxu0 0.0
        %671 = vmatprep.subr.mxu0 0.0
        %672 = vmatpush1.msra.mxu0 0.0
        %673 = vmatprep.subr.mxu0 0.0
        %674 = vmatpush1.msra.mxu0 0.0
        %675 = vmatprep.subr.mxu0 0.0
        %676 = vmatpush1.msra.mxu0 0.0
        %677 = vmatprep.subr.mxu0 0.0
        %678 = vmatpush1.msra.mxu0 0.0
        %679 = vmatprep.subr.mxu0 0.0
        %680 = vmatpush1.msra.mxu0 0.0
        %681 = vmatprep.subr.mxu0 0.0
        %682 = vmatpush1.msra.mxu0 0.0
        %683 = vmatprep.subr.mxu0 0.0
        %684 = vmatpush1.msra.mxu0 0.0
        %685 = vmatprep.subr.mxu0 0.0
        %686 = vmatpush1.msra.mxu0 0.0
        %687 = vmatprep.subr.mxu0 0.0
        %688 = vmatpush1.msra.mxu0 0.0
        %689 = vmatprep.subr.mxu0 0.0
        %690 = vmatpush1.msra.mxu0 0.0
        %691 = vmatprep.subr.mxu0 0.0
        %692 = vmatpush1.msra.mxu0 0.0
        %693 = vmatprep.subr.mxu0 0.0
        %694 = vmatpush1.msra.mxu0 0.0
        %695 = vmatprep.subr.mxu0 0.0
        %696 = vmatpush1.msra.mxu0 0.0
        %697 = vmatprep.subr.mxu0 0.0
        %698 = vmatpush1.msra.mxu0 0.0
        %699 = vmatprep.subr.mxu0 0.0
        %700 = vmatpush1.msra.mxu0 0.0
        %701 = vmatprep.subr.mxu0 0.0
        %702 = vmatpush1.msra.mxu0 0.0
        %703 = vmatprep.subr.mxu0 0.0
        %704 = vmatpush1.msra.mxu0 0.0
        %705 = vmatprep.subr.mxu0 0.0
        %706 = vmatpush1.msra.mxu0 0.0
        %707 = vmatprep.subr.mxu0 0.0
        %708 = vmatpush1.msra.mxu0 0.0
        %709 = vmatprep.subr.mxu0 0.0
        %710 = vmatpush1.msra.mxu0 0.0
        %711 = vmatprep.subr.mxu0 0.0
        %712 = vmatpush1.msra.mxu0 0.0
        %713 = vmatprep.mubr.f32.mxu0 0.0
        %714 = vmatmul.mubr.f32.gmra.mrb[0].mxu0 %v638
        %v715 = vpop.f32.mrb[0].mxu0
        %v716 = vadd.f32 0.0, %v715
        %v717 = vpop.f32.mrb[0].mxu0
        %718 = vmatprep.mubr.f32.mxu0 0.0
        %719 = vmatmul.mubr.f32.gmra.mrb[0].mxu0 %v641
        %v720 = vpop.f32.mrb[0].mxu0
        %v721 = vadd.f32 0.0, %v720
        %v722 = vpop.f32.mrb[0].mxu0
        %723 = vmatprep.mubr.f32.mxu0 0.0
        %724 = vmatmul.mubr.f32.gmra.mrb[0].mxu0 %v644
        %v725 = vpop.f32.mrb[0].mxu0
        %v726 = vadd.f32 0.0, %v725
        %v727 = vpop.f32.mrb[0].mxu0
        %728 = vmatprep.mubr.f32.mxu0 0.0
        %729 = vmatmul.mubr.f32.gmra.mrb[0].mxu0 %v647
        %v730 = vpop.f32.mrb[0].mxu0
        %v731 = vadd.f32 0.0, %v730
        %v732 = vpop.f32.mrb[0].mxu0
        %733 = vdwg.mxu0
        %v734 = vadd.f32 %v545, %v716
        %v735 = vadd.f32 %v550, %v721
        %v736 = vadd.f32 %v555, %v726
        %v737 = vadd.f32 %v560, %v731
        %738 = vxpose.xlu0.b32.start [1/16] %v734, 128
        %739 = vxpose.xlu0.b32.cont [2/16] %v735, 128
        %740 = vxpose.xlu0.b32.cont [3/16] %v736, 128
        %741 = vxpose.xlu0.b32.cont [4/16] %v737, 128
        %742 = vxpose.xlu0.b32.cont [5/16] 0.0, 128
        %743 = vxpose.xlu0.b32.cont [6/16] 0.0, 128
        %744 = vxpose.xlu0.b32.cont [7/16] 0.0, 128
        %745 = vxpose.xlu0.b32.cont [8/16] 0.0, 128
        %746 = vxpose.xlu0.b32.cont [9/16] 0.0, 128
        %747 = vxpose.xlu0.b32.cont [10/16] 0.0, 128
        %748 = vxpose.xlu0.b32.cont [11/16] 0.0, 128
        %749 = vxpose.xlu0.b32.cont [12/16] 0.0, 128
        %750 = vxpose.xlu0.b32.cont [13/16] 0.0, 128
        %751 = vxpose.xlu0.b32.cont [14/16] 0.0, 128
        %752 = vxpose.xlu0.b32.cont [15/16] 0.0, 128
        %753 = vxpose.xlu0.b32.end [16/16] 0.0, 128
        %v754 = vpop.trf.xlu0
        %v755 = vpop.trf.xlu0
        %v756 = vpop.trf.xlu0
        %v757 = vpop.trf.xlu0
        %v758 = vpop.trf.xlu0
        %v759 = vpop.trf.xlu0
        %v760 = vpop.trf.xlu0
        %v761 = vpop.trf.xlu0
        %v762 = vpop.trf.xlu0
        %v763 = vpop.trf.xlu0
        %v764 = vpop.trf.xlu0
        %v765 = vpop.trf.xlu0
        %v766 = vpop.trf.xlu0
        %v767 = vpop.trf.xlu0
        %v768 = vpop.trf.xlu0
        %v769 = vpop.trf.xlu0
        %v771 = vlaneseq
        %v772 = vshrl.u32 %v771, 7
        %v773 = vsub.s32 0, %v772
        %v774 = vrot.slane %v284, %v773
        %v776 = vadd.f32 %v754, %v774
        %v777 = vadd.f32 %v755, %v774
        %vm778 = vcmask 261120
        %779 = vst.msk [vmem:[%s259] sm:$0xff] %vm778, %v776
        %780 = vst.msk [vmem:[%s259 + $0x8] sm:$0xff] %vm778, %v777
        %s781 = scalar_lea.vmem %s228, 16 [#allocation2]
        %v782 = vld [vmem:[%s781] sm:$0xff]
        %v783 = vld [vmem:[%s781 + $0x8] sm:$0xff]
        %v784 = vmul.f32 %v782, 0.475
        %v785 = vmul.f32 %v783, 0.475
        %v786 = vadd.f32 %v784, %v270
        %v787 = vadd.f32 %v785, %v271
        %s788 = scalar_lea.vmem %s264, 8
        %v789 = vld [vmem:[%s788] sm:$0xff]
        %v790 = vmul.f32 %v789, 0.05
        %v792 = vsel %vm293, %v789, 0
        %794 = vmatprep.subr.mxu0 0.0
        %795 = vmatpush1.msra.mxu0 %v786
        %796 = vmatprep.subr.mxu0 0.0
        %797 = vmatpush1.msra.mxu0 %v787
        %798 = vmatprep.subr.mxu0 0.0
        %799 = vmatpush1.msra.mxu0 0.0
        %800 = vmatprep.subr.mxu0 0.0
        %801 = vmatpush1.msra.mxu0 0.0
        %802 = vmatprep.subr.mxu0 0.0
        %803 = vmatpush1.msra.mxu0 0.0
        %804 = vmatprep.subr.mxu0 0.0
        %805 = vmatpush1.msra.mxu0 0.0
        %806 = vmatprep.subr.mxu0 0.0
        %807 = vmatpush1.msra.mxu0 0.0
        %808 = vmatprep.subr.mxu0 0.0
        %809 = vmatpush1.msra.mxu0 0.0
        %810 = vmatprep.subr.mxu0 0.0
        %811 = vmatpush1.msra.mxu0 0.0
        %812 = vmatprep.subr.mxu0 0.0
        %813 = vmatpush1.msra.mxu0 0.0
        %814 = vmatprep.subr.mxu0 0.0
        %815 = vmatpush1.msra.mxu0 0.0
        %816 = vmatprep.subr.mxu0 0.0
        %817 = vmatpush1.msra.mxu0 0.0
        %818 = vmatprep.subr.mxu0 0.0
        %819 = vmatpush1.msra.mxu0 0.0
        %820 = vmatprep.subr.mxu0 0.0
        %821 = vmatpush1.msra.mxu0 0.0
        %822 = vmatprep.subr.mxu0 0.0
        %823 = vmatpush1.msra.mxu0 0.0
        %824 = vmatprep.subr.mxu0 0.0
        %825 = vmatpush1.msra.mxu0 0.0
        %826 = vmatprep.subr.mxu0 0.0
        %827 = vmatpush1.msra.mxu0 0.0
        %828 = vmatprep.subr.mxu0 0.0
        %829 = vmatpush1.msra.mxu0 0.0
        %830 = vmatprep.subr.mxu0 0.0
        %831 = vmatpush1.msra.mxu0 0.0
        %832 = vmatprep.subr.mxu0 0.0
        %833 = vmatpush1.msra.mxu0 0.0
        %834 = vmatprep.subr.mxu0 0.0
        %835 = vmatpush1.msra.mxu0 0.0
        %836 = vmatprep.subr.mxu0 0.0
        %837 = vmatpush1.msra.mxu0 0.0
        %838 = vmatprep.subr.mxu0 0.0
        %839 = vmatpush1.msra.mxu0 0.0
        %840 = vmatprep.subr.mxu0 0.0
        %841 = vmatpush1.msra.mxu0 0.0
        %842 = vmatprep.subr.mxu0 0.0
        %843 = vmatpush1.msra.mxu0 0.0
        %844 = vmatprep.subr.mxu0 0.0
        %845 = vmatpush1.msra.mxu0 0.0
        %846 = vmatprep.subr.mxu0 0.0
        %847 = vmatpush1.msra.mxu0 0.0
        %848 = vmatprep.subr.mxu0 0.0
        %849 = vmatpush1.msra.mxu0 0.0
        %850 = vmatprep.subr.mxu0 0.0
        %851 = vmatpush1.msra.mxu0 0.0
        %852 = vmatprep.subr.mxu0 0.0
        %853 = vmatpush1.msra.mxu0 0.0
        %854 = vmatprep.subr.mxu0 0.0
        %855 = vmatpush1.msra.mxu0 0.0
        %856 = vmatprep.subr.mxu0 0.0
        %857 = vmatpush1.msra.mxu0 0.0
        %858 = vmatprep.mubr.f32.mxu0 0.0
        %859 = vmatmul.mubr.f32.gmra.mrb[0].mxu0 %v792
        %v860 = vpop.f32.mrb[0].mxu0
        %v861 = vadd.f32 0.0, %v860
        %v862 = vpop.f32.mrb[0].mxu0
        %863 = vdwg.mxu0
        %v864 = vadd.f32 %v790, %v861
        %865 = vmatprep.subr.mxu0 0.0
        %866 = vmatpush1.msra.mxu0 %v864
        %867 = vmatprep.subr.mxu0 0.0
        %868 = vmatpush1.msra.mxu0 0.0
        %869 = vmatprep.subr.mxu0 0.0
        %870 = vmatpush1.msra.mxu0 0.0
        %871 = vmatprep.subr.mxu0 0.0
        %872 = vmatpush1.msra.mxu0 0.0
        %873 = vmatprep.subr.mxu0 0.0
        %874 = vmatpush1.msra.mxu0 0.0
        %875 = vmatprep.subr.mxu0 0.0
        %876 = vmatpush1.msra.mxu0 0.0
        %877 = vmatprep.subr.mxu0 0.0
        %878 = vmatpush1.msra.mxu0 0.0
        %879 = vmatprep.subr.mxu0 0.0
        %880 = vmatpush1.msra.mxu0 0.0
        %881 = vmatprep.subr.mxu0 0.0
        %882 = vmatpush1.msra.mxu0 0.0
        %883 = vmatprep.subr.mxu0 0.0
        %884 = vmatpush1.msra.mxu0 0.0
        %885 = vmatprep.subr.mxu0 0.0
        %886 = vmatpush1.msra.mxu0 0.0
        %887 = vmatprep.subr.mxu0 0.0
        %888 = vmatpush1.msra.mxu0 0.0
        %889 = vmatprep.subr.mxu0 0.0
        %890 = vmatpush1.msra.mxu0 0.0
        %891 = vmatprep.subr.mxu0 0.0
        %892 = vmatpush1.msra.mxu0 0.0
        %893 = vmatprep.subr.mxu0 0.0
        %894 = vmatpush1.msra.mxu0 0.0
        %895 = vmatprep.subr.mxu0 0.0
        %896 = vmatpush1.msra.mxu0 0.0
        %897 = vmatprep.subr.mxu0 0.0
        %898 = vmatpush1.msra.mxu0 0.0
        %899 = vmatprep.subr.mxu0 0.0
        %900 = vmatpush1.msra.mxu0 0.0
        %901 = vmatprep.subr.mxu0 0.0
        %902 = vmatpush1.msra.mxu0 0.0
        %903 = vmatprep.subr.mxu0 0.0
        %904 = vmatpush1.msra.mxu0 0.0
        %905 = vmatprep.subr.mxu0 0.0
        %906 = vmatpush1.msra.mxu0 0.0
        %907 = vmatprep.subr.mxu0 0.0
        %908 = vmatpush1.msra.mxu0 0.0
        %909 = vmatprep.subr.mxu0 0.0
        %910 = vmatpush1.msra.mxu0 0.0
        %911 = vmatprep.subr.mxu0 0.0
        %912 = vmatpush1.msra.mxu0 0.0
        %913 = vmatprep.subr.mxu0 0.0
        %914 = vmatpush1.msra.mxu0 0.0
        %915 = vmatprep.subr.mxu0 0.0
        %916 = vmatpush1.msra.mxu0 0.0
        %917 = vmatprep.subr.mxu0 0.0
        %918 = vmatpush1.msra.mxu0 0.0
        %919 = vmatprep.subr.mxu0 0.0
        %920 = vmatpush1.msra.mxu0 0.0
        %921 = vmatprep.subr.mxu0 0.0
        %922 = vmatpush1.msra.mxu0 0.0
        %923 = vmatprep.subr.mxu0 0.0
        %924 = vmatpush1.msra.mxu0 0.0
        %925 = vmatprep.subr.mxu0 0.0
        %926 = vmatpush1.msra.mxu0 0.0
        %927 = vmatprep.subr.mxu0 0.0
        %928 = vmatpush1.msra.mxu0 0.0
        %929 = vmatprep.mubr.f32.mxu0 0.0
        %930 = vmatmul.mubr.f32.gmra.mrb[0].mxu0 %v370
        %v931 = vpop.f32.mrb[0].mxu0
        %v932 = vadd.f32 0.0, %v931
        %v933 = vpop.f32.mrb[0].mxu0
        %934 = vmatprep.mubr.f32.mxu0 0.0
        %935 = vmatmul.mubr.f32.gmra.mrb[0].mxu0 %v373
        %v936 = vpop.f32.mrb[0].mxu0
        %v937 = vadd.f32 0.0, %v936
        %v938 = vpop.f32.mrb[0].mxu0
        %939 = vmatprep.mubr.f32.mxu0 0.0
        %940 = vmatmul.mubr.f32.gmra.mrb[0].mxu0 %v376
        %v941 = vpop.f32.mrb[0].mxu0
        %v942 = vadd.f32 0.0, %v941
        %v943 = vpop.f32.mrb[0].mxu0
        %944 = vmatprep.mubr.f32.mxu0 0.0
        %945 = vmatmul.mubr.f32.gmra.mrb[0].mxu0 %v379
        %v946 = vpop.f32.mrb[0].mxu0
        %v947 = vadd.f32 0.0, %v946
        %v948 = vpop.f32.mrb[0].mxu0
        %949 = vdwg.mxu0
        %950 = vmatprep.subr.mxu0 0.0
        %951 = vmatpush1.msra.mxu0 %v789
        %952 = vmatprep.subr.mxu0 0.0
        %953 = vmatpush1.msra.mxu0 0.0
        %954 = vmatprep.subr.mxu0 0.0
        %955 = vmatpush1.msra.mxu0 0.0
        %956 = vmatprep.subr.mxu0 0.0
        %957 = vmatpush1.msra.mxu0 0.0
        %958 = vmatprep.subr.mxu0 0.0
        %959 = vmatpush1.msra.mxu0 0.0
        %960 = vmatprep.subr.mxu0 0.0
        %961 = vmatpush1.msra.mxu0 0.0
        %962 = vmatprep.subr.mxu0 0.0
        %963 = vmatpush1.msra.mxu0 0.0
        %964 = vmatprep.subr.mxu0 0.0
        %965 = vmatpush1.msra.mxu0 0.0
        %966 = vmatprep.subr.mxu0 0.0
        %967 = vmatpush1.msra.mxu0 0.0
        %968 = vmatprep.subr.mxu0 0.0
        %969 = vmatpush1.msra.mxu0 0.0
        %970 = vmatprep.subr.mxu0 0.0
        %971 = vmatpush1.msra.mxu0 0.0
        %972 = vmatprep.subr.mxu0 0.0
        %973 = vmatpush1.msra.mxu0 0.0
        %974 = vmatprep.subr.mxu0 0.0
        %975 = vmatpush1.msra.mxu0 0.0
        %976 = vmatprep.subr.mxu0 0.0
        %977 = vmatpush1.msra.mxu0 0.0
        %978 = vmatprep.subr.mxu0 0.0
        %979 = vmatpush1.msra.mxu0 0.0
        %980 = vmatprep.subr.mxu0 0.0
        %981 = vmatpush1.msra.mxu0 0.0
        %982 = vmatprep.subr.mxu0 0.0
        %983 = vmatpush1.msra.mxu0 0.0
        %984 = vmatprep.subr.mxu0 0.0
        %985 = vmatpush1.msra.mxu0 0.0
        %986 = vmatprep.subr.mxu0 0.0
        %987 = vmatpush1.msra.mxu0 0.0
        %988 = vmatprep.subr.mxu0 0.0
        %989 = vmatpush1.msra.mxu0 0.0
        %990 = vmatprep.subr.mxu0 0.0
        %991 = vmatpush1.msra.mxu0 0.0
        %992 = vmatprep.subr.mxu0 0.0
        %993 = vmatpush1.msra.mxu0 0.0
        %994 = vmatprep.subr.mxu0 0.0
        %995 = vmatpush1.msra.mxu0 0.0
        %996 = vmatprep.subr.mxu0 0.0
        %997 = vmatpush1.msra.mxu0 0.0
        %998 = vmatprep.subr.mxu0 0.0
        %999 = vmatpush1.msra.mxu0 0.0
        %1000 = vmatprep.subr.mxu0 0.0
        %1001 = vmatpush1.msra.mxu0 0.0
        %1002 = vmatprep.subr.mxu0 0.0
        %1003 = vmatpush1.msra.mxu0 0.0
        %1004 = vmatprep.subr.mxu0 0.0
        %1005 = vmatpush1.msra.mxu0 0.0
        %1006 = vmatprep.subr.mxu0 0.0
        %1007 = vmatpush1.msra.mxu0 0.0
        %1008 = vmatprep.subr.mxu0 0.0
        %1009 = vmatpush1.msra.mxu0 0.0
        %1010 = vmatprep.subr.mxu0 0.0
        %1011 = vmatpush1.msra.mxu0 0.0
        %1012 = vmatprep.subr.mxu0 0.0
        %1013 = vmatpush1.msra.mxu0 0.0
        %1014 = vmatprep.mubr.f32.mxu0 0.0
        %1015 = vmatmul.mubr.f32.gmra.mrb[0].mxu0 %v467
        %v1016 = vpop.f32.mrb[0].mxu0
        %v1017 = vadd.f32 %v932, %v1016
        %v1018 = vpop.f32.mrb[0].mxu0
        %1019 = vmatprep.mubr.f32.mxu0 0.0
        %1020 = vmatmul.mubr.f32.gmra.mrb[0].mxu0 %v470
        %v1021 = vpop.f32.mrb[0].mxu0
        %v1022 = vadd.f32 %v937, %v1021
        %v1023 = vpop.f32.mrb[0].mxu0
        %1024 = vmatprep.mubr.f32.mxu0 0.0
        %1025 = vmatmul.mubr.f32.gmra.mrb[0].mxu0 %v473
        %v1026 = vpop.f32.mrb[0].mxu0
        %v1027 = vadd.f32 %v942, %v1026
        %v1028 = vpop.f32.mrb[0].mxu0
        %1029 = vmatprep.mubr.f32.mxu0 0.0
        %1030 = vmatmul.mubr.f32.gmra.mrb[0].mxu0 %v476
        %v1031 = vpop.f32.mrb[0].mxu0
        %v1032 = vadd.f32 %v947, %v1031
        %v1033 = vpop.f32.mrb[0].mxu0
        %1034 = vdwg.mxu0
        %v1036 = vsel %vm293, %v864, 0
        %1038 = vmatprep.subr.mxu0 0.0
        %1039 = vmatpush1.msra.mxu0 %v786
        %1040 = vmatprep.subr.mxu0 0.0
        %1041 = vmatpush1.msra.mxu0 %v787
        %1042 = vmatprep.subr.mxu0 0.0
        %1043 = vmatpush1.msra.mxu0 0.0
        %1044 = vmatprep.subr.mxu0 0.0
        %1045 = vmatpush1.msra.mxu0 0.0
        %1046 = vmatprep.subr.mxu0 0.0
        %1047 = vmatpush1.msra.mxu0 0.0
        %1048 = vmatprep.subr.mxu0 0.0
        %1049 = vmatpush1.msra.mxu0 0.0
        %1050 = vmatprep.subr.mxu0 0.0
        %1051 = vmatpush1.msra.mxu0 0.0
        %1052 = vmatprep.subr.mxu0 0.0
        %1053 = vmatpush1.msra.mxu0 0.0
        %1054 = vmatprep.subr.mxu0 0.0
        %1055 = vmatpush1.msra.mxu0 0.0
        %1056 = vmatprep.subr.mxu0 0.0
        %1057 = vmatpush1.msra.mxu0 0.0
        %1058 = vmatprep.subr.mxu0 0.0
        %1059 = vmatpush1.msra.mxu0 0.0
        %1060 = vmatprep.subr.mxu0 0.0
        %1061 = vmatpush1.msra.mxu0 0.0
        %1062 = vmatprep.subr.mxu0 0.0
        %1063 = vmatpush1.msra.mxu0 0.0
        %1064 = vmatprep.subr.mxu0 0.0
        %1065 = vmatpush1.msra.mxu0 0.0
        %1066 = vmatprep.subr.mxu0 0.0
        %1067 = vmatpush1.msra.mxu0 0.0
        %1068 = vmatprep.subr.mxu0 0.0
        %1069 = vmatpush1.msra.mxu0 0.0
        %1070 = vmatprep.subr.mxu0 0.0
        %1071 = vmatpush1.msra.mxu0 0.0
        %1072 = vmatprep.subr.mxu0 0.0
        %1073 = vmatpush1.msra.mxu0 0.0
        %1074 = vmatprep.subr.mxu0 0.0
        %1075 = vmatpush1.msra.mxu0 0.0
        %1076 = vmatprep.subr.mxu0 0.0
        %1077 = vmatpush1.msra.mxu0 0.0
        %1078 = vmatprep.subr.mxu0 0.0
        %1079 = vmatpush1.msra.mxu0 0.0
        %1080 = vmatprep.subr.mxu0 0.0
        %1081 = vmatpush1.msra.mxu0 0.0
        %1082 = vmatprep.subr.mxu0 0.0
        %1083 = vmatpush1.msra.mxu0 0.0
        %1084 = vmatprep.subr.mxu0 0.0
        %1085 = vmatpush1.msra.mxu0 0.0
        %1086 = vmatprep.subr.mxu0 0.0
        %1087 = vmatpush1.msra.mxu0 0.0
        %1088 = vmatprep.subr.mxu0 0.0
        %1089 = vmatpush1.msra.mxu0 0.0
        %1090 = vmatprep.subr.mxu0 0.0
        %1091 = vmatpush1.msra.mxu0 0.0
        %1092 = vmatprep.subr.mxu0 0.0
        %1093 = vmatpush1.msra.mxu0 0.0
        %1094 = vmatprep.subr.mxu0 0.0
        %1095 = vmatpush1.msra.mxu0 0.0
        %1096 = vmatprep.subr.mxu0 0.0
        %1097 = vmatpush1.msra.mxu0 0.0
        %1098 = vmatprep.subr.mxu0 0.0
        %1099 = vmatpush1.msra.mxu0 0.0
        %1100 = vmatprep.subr.mxu0 0.0
        %1101 = vmatpush1.msra.mxu0 0.0
        %1102 = vmatprep.mubr.f32.mxu0 0.0
        %1103 = vmatmul.mubr.f32.gmra.mrb[0].mxu0 %v1036
        %v1104 = vpop.f32.mrb[0].mxu0
        %v1105 = vadd.f32 0.0, %v1104
        %v1106 = vpop.f32.mrb[0].mxu0
        %1107 = vdwg.mxu0
        %v1108 = vadd.f32 %v790, %v1105
        %1109 = vmatprep.subr.mxu0 0.0
        %1110 = vmatpush1.msra.mxu0 %v1108
        %1111 = vmatprep.subr.mxu0 0.0
        %1112 = vmatpush1.msra.mxu0 0.0
        %1113 = vmatprep.subr.mxu0 0.0
        %1114 = vmatpush1.msra.mxu0 0.0
        %1115 = vmatprep.subr.mxu0 0.0
        %1116 = vmatpush1.msra.mxu0 0.0
        %1117 = vmatprep.subr.mxu0 0.0
        %1118 = vmatpush1.msra.mxu0 0.0
        %1119 = vmatprep.subr.mxu0 0.0
        %1120 = vmatpush1.msra.mxu0 0.0
        %1121 = vmatprep.subr.mxu0 0.0
        %1122 = vmatpush1.msra.mxu0 0.0
        %1123 = vmatprep.subr.mxu0 0.0
        %1124 = vmatpush1.msra.mxu0 0.0
        %1125 = vmatprep.subr.mxu0 0.0
        %1126 = vmatpush1.msra.mxu0 0.0
        %1127 = vmatprep.subr.mxu0 0.0
        %1128 = vmatpush1.msra.mxu0 0.0
        %1129 = vmatprep.subr.mxu0 0.0
        %1130 = vmatpush1.msra.mxu0 0.0
        %1131 = vmatprep.subr.mxu0 0.0
        %1132 = vmatpush1.msra.mxu0 0.0
        %1133 = vmatprep.subr.mxu0 0.0
        %1134 = vmatpush1.msra.mxu0 0.0
        %1135 = vmatprep.subr.mxu0 0.0
        %1136 = vmatpush1.msra.mxu0 0.0
        %1137 = vmatprep.subr.mxu0 0.0
        %1138 = vmatpush1.msra.mxu0 0.0
        %1139 = vmatprep.subr.mxu0 0.0
        %1140 = vmatpush1.msra.mxu0 0.0
        %1141 = vmatprep.subr.mxu0 0.0
        %1142 = vmatpush1.msra.mxu0 0.0
        %1143 = vmatprep.subr.mxu0 0.0
        %1144 = vmatpush1.msra.mxu0 0.0
        %1145 = vmatprep.subr.mxu0 0.0
        %1146 = vmatpush1.msra.mxu0 0.0
        %1147 = vmatprep.subr.mxu0 0.0
        %1148 = vmatpush1.msra.mxu0 0.0
        %1149 = vmatprep.subr.mxu0 0.0
        %1150 = vmatpush1.msra.mxu0 0.0
        %1151 = vmatprep.subr.mxu0 0.0
        %1152 = vmatpush1.msra.mxu0 0.0
        %1153 = vmatprep.subr.mxu0 0.0
        %1154 = vmatpush1.msra.mxu0 0.0
        %1155 = vmatprep.subr.mxu0 0.0
        %1156 = vmatpush1.msra.mxu0 0.0
        %1157 = vmatprep.subr.mxu0 0.0
        %1158 = vmatpush1.msra.mxu0 0.0
        %1159 = vmatprep.subr.mxu0 0.0
        %1160 = vmatpush1.msra.mxu0 0.0
        %1161 = vmatprep.subr.mxu0 0.0
        %1162 = vmatpush1.msra.mxu0 0.0
        %1163 = vmatprep.subr.mxu0 0.0
        %1164 = vmatpush1.msra.mxu0 0.0
        %1165 = vmatprep.subr.mxu0 0.0
        %1166 = vmatpush1.msra.mxu0 0.0
        %1167 = vmatprep.subr.mxu0 0.0
        %1168 = vmatpush1.msra.mxu0 0.0
        %1169 = vmatprep.subr.mxu0 0.0
        %1170 = vmatpush1.msra.mxu0 0.0
        %1171 = vmatprep.subr.mxu0 0.0
        %1172 = vmatpush1.msra.mxu0 0.0
        %1173 = vmatprep.mubr.f32.mxu0 0.0
        %1174 = vmatmul.mubr.f32.gmra.mrb[0].mxu0 %v638
        %v1175 = vpop.f32.mrb[0].mxu0
        %v1176 = vadd.f32 0.0, %v1175
        %v1177 = vpop.f32.mrb[0].mxu0
        %1178 = vmatprep.mubr.f32.mxu0 0.0
        %1179 = vmatmul.mubr.f32.gmra.mrb[0].mxu0 %v641
        %v1180 = vpop.f32.mrb[0].mxu0
        %v1181 = vadd.f32 0.0, %v1180
        %v1182 = vpop.f32.mrb[0].mxu0
        %1183 = vmatprep.mubr.f32.mxu0 0.0
        %1184 = vmatmul.mubr.f32.gmra.mrb[0].mxu0 %v644
        %v1185 = vpop.f32.mrb[0].mxu0
        %v1186 = vadd.f32 0.0, %v1185
        %v1187 = vpop.f32.mrb[0].mxu0
        %1188 = vmatprep.mubr.f32.mxu0 0.0
        %1189 = vmatmul.mubr.f32.gmra.mrb[0].mxu0 %v647
        %v1190 = vpop.f32.mrb[0].mxu0
        %v1191 = vadd.f32 0.0, %v1190
        %v1192 = vpop.f32.mrb[0].mxu0
        %1193 = vdwg.mxu0
        %v1194 = vadd.f32 %v1017, %v1176
        %v1195 = vadd.f32 %v1022, %v1181
        %v1196 = vadd.f32 %v1027, %v1186
        %v1197 = vadd.f32 %v1032, %v1191
        %1198 = vxpose.xlu0.b32.start [1/16] %v1194, 128
        %1199 = vxpose.xlu0.b32.cont [2/16] %v1195, 128
        %1200 = vxpose.xlu0.b32.cont [3/16] %v1196, 128
        %1201 = vxpose.xlu0.b32.cont [4/16] %v1197, 128
        %1202 = vxpose.xlu0.b32.cont [5/16] 0.0, 128
        %1203 = vxpose.xlu0.b32.cont [6/16] 0.0, 128
        %1204 = vxpose.xlu0.b32.cont [7/16] 0.0, 128
        %1205 = vxpose.xlu0.b32.cont [8/16] 0.0, 128
        %1206 = vxpose.xlu0.b32.cont [9/16] 0.0, 128
        %1207 = vxpose.xlu0.b32.cont [10/16] 0.0, 128
        %1208 = vxpose.xlu0.b32.cont [11/16] 0.0, 128
        %1209 = vxpose.xlu0.b32.cont [12/16] 0.0, 128
        %1210 = vxpose.xlu0.b32.cont [13/16] 0.0, 128
        %1211 = vxpose.xlu0.b32.cont [14/16] 0.0, 128
        %1212 = vxpose.xlu0.b32.cont [15/16] 0.0, 128
        %1213 = vxpose.xlu0.b32.end [16/16] 0.0, 128
        %v1214 = vpop.trf.xlu0
        %v1215 = vpop.trf.xlu0
        %v1216 = vpop.trf.xlu0
        %v1217 = vpop.trf.xlu0
        %v1218 = vpop.trf.xlu0
        %v1219 = vpop.trf.xlu0
        %v1220 = vpop.trf.xlu0
        %v1221 = vpop.trf.xlu0
        %v1222 = vpop.trf.xlu0
        %v1223 = vpop.trf.xlu0
        %v1224 = vpop.trf.xlu0
        %v1225 = vpop.trf.xlu0
        %v1226 = vpop.trf.xlu0
        %v1227 = vpop.trf.xlu0
        %v1228 = vpop.trf.xlu0
        %v1229 = vpop.trf.xlu0
        %v1230 = vadd.f32 %v1214, %v774
        %v1231 = vadd.f32 %v1215, %v774
        %s1232 = scalar_lea.vmem %s259, 16 [#allocation5]
        %1233 = vst.msk [vmem:[%s1232] sm:$0xff] %vm778, %v1230
        %1234 = vst.msk [vmem:[%s1232 + $0x8] sm:$0xff] %vm778, %v1231
        %s1235 = scalar_lea.vmem %s228, 32 [#allocation2]
        %v1236 = vld [vmem:[%s1235] sm:$0xff]
        %v1237 = vld [vmem:[%s1235 + $0x8] sm:$0xff]
        %v1238 = vmul.f32 %v1236, 0.475
        %v1239 = vmul.f32 %v1237, 0.475
        %v1240 = vadd.f32 %v1238, %v270
        %v1241 = vadd.f32 %v1239, %v271
        %s1242 = scalar_lea.vmem %s264, 16
        %v1243 = vld [vmem:[%s1242] sm:$0xff]
        %v1244 = vmul.f32 %v1243, 0.05
        %v1246 = vsel %vm293, %v1243, 0
        %1248 = vmatprep.subr.mxu0 0.0
        %1249 = vmatpush1.msra.mxu0 %v1240
        %1250 = vmatprep.subr.mxu0 0.0
        %1251 = vmatpush1.msra.mxu0 %v1241
        %1252 = vmatprep.subr.mxu0 0.0
        %1253 = vmatpush1.msra.mxu0 0.0
        %1254 = vmatprep.subr.mxu0 0.0
        %1255 = vmatpush1.msra.mxu0 0.0
        %1256 = vmatprep.subr.mxu0 0.0
        %1257 = vmatpush1.msra.mxu0 0.0
        %1258 = vmatprep.subr.mxu0 0.0
        %1259 = vmatpush1.msra.mxu0 0.0
        %1260 = vmatprep.subr.mxu0 0.0
        %1261 = vmatpush1.msra.mxu0 0.0
        %1262 = vmatprep.subr.mxu0 0.0
        %1263 = vmatpush1.msra.mxu0 0.0
        %1264 = vmatprep.subr.mxu0 0.0
        %1265 = vmatpush1.msra.mxu0 0.0
        %1266 = vmatprep.subr.mxu0 0.0
        %1267 = vmatpush1.msra.mxu0 0.0
        %1268 = vmatprep.subr.mxu0 0.0
        %1269 = vmatpush1.msra.mxu0 0.0
        %1270 = vmatprep.subr.mxu0 0.0
        %1271 = vmatpush1.msra.mxu0 0.0
        %1272 = vmatprep.subr.mxu0 0.0
        %1273 = vmatpush1.msra.mxu0 0.0
        %1274 = vmatprep.subr.mxu0 0.0
        %1275 = vmatpush1.msra.mxu0 0.0
        %1276 = vmatprep.subr.mxu0 0.0
        %1277 = vmatpush1.msra.mxu0 0.0
        %1278 = vmatprep.subr.mxu0 0.0
        %1279 = vmatpush1.msra.mxu0 0.0
        %1280 = vmatprep.subr.mxu0 0.0
        %1281 = vmatpush1.msra.mxu0 0.0
        %1282 = vmatprep.subr.mxu0 0.0
        %1283 = vmatpush1.msra.mxu0 0.0
        %1284 = vmatprep.subr.mxu0 0.0
        %1285 = vmatpush1.msra.mxu0 0.0
        %1286 = vmatprep.subr.mxu0 0.0
        %1287 = vmatpush1.msra.mxu0 0.0
        %1288 = vmatprep.subr.mxu0 0.0
        %1289 = vmatpush1.msra.mxu0 0.0
        %1290 = vmatprep.subr.mxu0 0.0
        %1291 = vmatpush1.msra.mxu0 0.0
        %1292 = vmatprep.subr.mxu0 0.0
        %1293 = vmatpush1.msra.mxu0 0.0
        %1294 = vmatprep.subr.mxu0 0.0
        %1295 = vmatpush1.msra.mxu0 0.0
        %1296 = vmatprep.subr.mxu0 0.0
        %1297 = vmatpush1.msra.mxu0 0.0
        %1298 = vmatprep.subr.mxu0 0.0
        %1299 = vmatpush1.msra.mxu0 0.0
        %1300 = vmatprep.subr.mxu0 0.0
        %1301 = vmatpush1.msra.mxu0 0.0
        %1302 = vmatprep.subr.mxu0 0.0
        %1303 = vmatpush1.msra.mxu0 0.0
        %1304 = vmatprep.subr.mxu0 0.0
        %1305 = vmatpush1.msra.mxu0 0.0
        %1306 = vmatprep.subr.mxu0 0.0
        %1307 = vmatpush1.msra.mxu0 0.0
        %1308 = vmatprep.subr.mxu0 0.0
        %1309 = vmatpush1.msra.mxu0 0.0
        %1310 = vmatprep.subr.mxu0 0.0
        %1311 = vmatpush1.msra.mxu0 0.0
        %1312 = vmatprep.mubr.f32.mxu0 0.0
        %1313 = vmatmul.mubr.f32.gmra.mrb[0].mxu0 %v1246
        %v1314 = vpop.f32.mrb[0].mxu0
        %v1315 = vadd.f32 0.0, %v1314
        %v1316 = vpop.f32.mrb[0].mxu0
        %1317 = vdwg.mxu0
        %v1318 = vadd.f32 %v1244, %v1315
        %1319 = vmatprep.subr.mxu0 0.0
        %1320 = vmatpush1.msra.mxu0 %v1318
        %1321 = vmatprep.subr.mxu0 0.0
        %1322 = vmatpush1.msra.mxu0 0.0
        %1323 = vmatprep.subr.mxu0 0.0
        %1324 = vmatpush1.msra.mxu0 0.0
        %1325 = vmatprep.subr.mxu0 0.0
        %1326 = vmatpush1.msra.mxu0 0.0
        %1327 = vmatprep.subr.mxu0 0.0
        %1328 = vmatpush1.msra.mxu0 0.0
        %1329 = vmatprep.subr.mxu0 0.0
        %1330 = vmatpush1.msra.mxu0 0.0
        %1331 = vmatprep.subr.mxu0 0.0
        %1332 = vmatpush1.msra.mxu0 0.0
        %1333 = vmatprep.subr.mxu0 0.0
        %1334 = vmatpush1.msra.mxu0 0.0
        %1335 = vmatprep.subr.mxu0 0.0
        %1336 = vmatpush1.msra.mxu0 0.0
        %1337 = vmatprep.subr.mxu0 0.0
        %1338 = vmatpush1.msra.mxu0 0.0
        %1339 = vmatprep.subr.mxu0 0.0
        %1340 = vmatpush1.msra.mxu0 0.0
        %1341 = vmatprep.subr.mxu0 0.0
        %1342 = vmatpush1.msra.mxu0 0.0
        %1343 = vmatprep.subr.mxu0 0.0
        %1344 = vmatpush1.msra.mxu0 0.0
        %1345 = vmatprep.subr.mxu0 0.0
        %1346 = vmatpush1.msra.mxu0 0.0
        %1347 = vmatprep.subr.mxu0 0.0
        %1348 = vmatpush1.msra.mxu0 0.0
        %1349 = vmatprep.subr.mxu0 0.0
        %1350 = vmatpush1.msra.mxu0 0.0
        %1351 = vmatprep.subr.mxu0 0.0
        %1352 = vmatpush1.msra.mxu0 0.0
        %1353 = vmatprep.subr.mxu0 0.0
        %1354 = vmatpush1.msra.mxu0 0.0
        %1355 = vmatprep.subr.mxu0 0.0
        %1356 = vmatpush1.msra.mxu0 0.0
        %1357 = vmatprep.subr.mxu0 0.0
        %1358 = vmatpush1.msra.mxu0 0.0
        %1359 = vmatprep.subr.mxu0 0.0
        %1360 = vmatpush1.msra.mxu0 0.0
        %1361 = vmatprep.subr.mxu0 0.0
        %1362 = vmatpush1.msra.mxu0 0.0
        %1363 = vmatprep.subr.mxu0 0.0
        %1364 = vmatpush1.msra.mxu0 0.0
        %1365 = vmatprep.subr.mxu0 0.0
        %1366 = vmatpush1.msra.mxu0 0.0
        %1367 = vmatprep.subr.mxu0 0.0
        %1368 = vmatpush1.msra.mxu0 0.0
        %1369 = vmatprep.subr.mxu0 0.0
        %1370 = vmatpush1.msra.mxu0 0.0
        %1371 = vmatprep.subr.mxu0 0.0
        %1372 = vmatpush1.msra.mxu0 0.0
        %1373 = vmatprep.subr.mxu0 0.0
        %1374 = vmatpush1.msra.mxu0 0.0
        %1375 = vmatprep.subr.mxu0 0.0
        %1376 = vmatpush1.msra.mxu0 0.0
        %1377 = vmatprep.subr.mxu0 0.0
        %1378 = vmatpush1.msra.mxu0 0.0
        %1379 = vmatprep.subr.mxu0 0.0
        %1380 = vmatpush1.msra.mxu0 0.0
        %1381 = vmatprep.subr.mxu0 0.0
        %1382 = vmatpush1.msra.mxu0 0.0
        %1383 = vmatprep.mubr.f32.mxu0 0.0
        %1384 = vmatmul.mubr.f32.gmra.mrb[0].mxu0 %v370
        %v1385 = vpop.f32.mrb[0].mxu0
        %v1386 = vadd.f32 0.0, %v1385
        %v1387 = vpop.f32.mrb[0].mxu0
        %1388 = vmatprep.mubr.f32.mxu0 0.0
        %1389 = vmatmul.mubr.f32.gmra.mrb[0].mxu0 %v373
        %v1390 = vpop.f32.mrb[0].mxu0
        %v1391 = vadd.f32 0.0, %v1390
        %v1392 = vpop.f32.mrb[0].mxu0
        %1393 = vmatprep.mubr.f32.mxu0 0.0
        %1394 = vmatmul.mubr.f32.gmra.mrb[0].mxu0 %v376
        %v1395 = vpop.f32.mrb[0].mxu0
        %v1396 = vadd.f32 0.0, %v1395
        %v1397 = vpop.f32.mrb[0].mxu0
        %1398 = vmatprep.mubr.f32.mxu0 0.0
        %1399 = vmatmul.mubr.f32.gmra.mrb[0].mxu0 %v379
        %v1400 = vpop.f32.mrb[0].mxu0
        %v1401 = vadd.f32 0.0, %v1400
        %v1402 = vpop.f32.mrb[0].mxu0
        %1403 = vdwg.mxu0
        %1404 = vmatprep.subr.mxu0 0.0
        %1405 = vmatpush1.msra.mxu0 %v1243
        %1406 = vmatprep.subr.mxu0 0.0
        %1407 = vmatpush1.msra.mxu0 0.0
        %1408 = vmatprep.subr.mxu0 0.0
        %1409 = vmatpush1.msra.mxu0 0.0
        %1410 = vmatprep.subr.mxu0 0.0
        %1411 = vmatpush1.msra.mxu0 0.0
        %1412 = vmatprep.subr.mxu0 0.0
        %1413 = vmatpush1.msra.mxu0 0.0
        %1414 = vmatprep.subr.mxu0 0.0
        %1415 = vmatpush1.msra.mxu0 0.0
        %1416 = vmatprep.subr.mxu0 0.0
        %1417 = vmatpush1.msra.mxu0 0.0
        %1418 = vmatprep.subr.mxu0 0.0
        %1419 = vmatpush1.msra.mxu0 0.0
        %1420 = vmatprep.subr.mxu0 0.0
        %1421 = vmatpush1.msra.mxu0 0.0
        %1422 = vmatprep.subr.mxu0 0.0
        %1423 = vmatpush1.msra.mxu0 0.0
        %1424 = vmatprep.subr.mxu0 0.0
        %1425 = vmatpush1.msra.mxu0 0.0
        %1426 = vmatprep.subr.mxu0 0.0
        %1427 = vmatpush1.msra.mxu0 0.0
        %1428 = vmatprep.subr.mxu0 0.0
        %1429 = vmatpush1.msra.mxu0 0.0
        %1430 = vmatprep.subr.mxu0 0.0
        %1431 = vmatpush1.msra.mxu0 0.0
        %1432 = vmatprep.subr.mxu0 0.0
        %1433 = vmatpush1.msra.mxu0 0.0
        %1434 = vmatprep.subr.mxu0 0.0
        %1435 = vmatpush1.msra.mxu0 0.0
        %1436 = vmatprep.subr.mxu0 0.0
        %1437 = vmatpush1.msra.mxu0 0.0
        %1438 = vmatprep.subr.mxu0 0.0
        %1439 = vmatpush1.msra.mxu0 0.0
        %1440 = vmatprep.subr.mxu0 0.0
        %1441 = vmatpush1.msra.mxu0 0.0
        %1442 = vmatprep.subr.mxu0 0.0
        %1443 = vmatpush1.msra.mxu0 0.0
        %1444 = vmatprep.subr.mxu0 0.0
        %1445 = vmatpush1.msra.mxu0 0.0
        %1446 = vmatprep.subr.mxu0 0.0
        %1447 = vmatpush1.msra.mxu0 0.0
        %1448 = vmatprep.subr.mxu0 0.0
        %1449 = vmatpush1.msra.mxu0 0.0
        %1450 = vmatprep.subr.mxu0 0.0
        %1451 = vmatpush1.msra.mxu0 0.0
        %1452 = vmatprep.subr.mxu0 0.0
        %1453 = vmatpush1.msra.mxu0 0.0
        %1454 = vmatprep.subr.mxu0 0.0
        %1455 = vmatpush1.msra.mxu0 0.0
        %1456 = vmatprep.subr.mxu0 0.0
        %1457 = vmatpush1.msra.mxu0 0.0
        %1458 = vmatprep.subr.mxu0 0.0
        %1459 = vmatpush1.msra.mxu0 0.0
        %1460 = vmatprep.subr.mxu0 0.0
        %1461 = vmatpush1.msra.mxu0 0.0
        %1462 = vmatprep.subr.mxu0 0.0
        %1463 = vmatpush1.msra.mxu0 0.0
        %1464 = vmatprep.subr.mxu0 0.0
        %1465 = vmatpush1.msra.mxu0 0.0
        %1466 = vmatprep.subr.mxu0 0.0
        %1467 = vmatpush1.msra.mxu0 0.0
        %1468 = vmatprep.mubr.f32.mxu0 0.0
        %1469 = vmatmul.mubr.f32.gmra.mrb[0].mxu0 %v467
        %v1470 = vpop.f32.mrb[0].mxu0
        %v1471 = vadd.f32 %v1386, %v1470
        %v1472 = vpop.f32.mrb[0].mxu0
        %1473 = vmatprep.mubr.f32.mxu0 0.0
        %1474 = vmatmul.mubr.f32.gmra.mrb[0].mxu0 %v470
        %v1475 = vpop.f32.mrb[0].mxu0
        %v1476 = vadd.f32 %v1391, %v1475
        %v1477 = vpop.f32.mrb[0].mxu0
        %1478 = vmatprep.mubr.f32.mxu0 0.0
        %1479 = vmatmul.mubr.f32.gmra.mrb[0].mxu0 %v473
        %v1480 = vpop.f32.mrb[0].mxu0
        %v1481 = vadd.f32 %v1396, %v1480
        %v1482 = vpop.f32.mrb[0].mxu0
        %1483 = vmatprep.mubr.f32.mxu0 0.0
        %1484 = vmatmul.mubr.f32.gmra.mrb[0].mxu0 %v476
        %v1485 = vpop.f32.mrb[0].mxu0
        %v1486 = vadd.f32 %v1401, %v1485
        %v1487 = vpop.f32.mrb[0].mxu0
        %1488 = vdwg.mxu0
        %v1490 = vsel %vm293, %v1318, 0
        %1492 = vmatprep.subr.mxu0 0.0
        %1493 = vmatpush1.msra.mxu0 %v1240
        %1494 = vmatprep.subr.mxu0 0.0
        %1495 = vmatpush1.msra.mxu0 %v1241
        %1496 = vmatprep.subr.mxu0 0.0
        %1497 = vmatpush1.msra.mxu0 0.0
        %1498 = vmatprep.subr.mxu0 0.0
        %1499 = vmatpush1.msra.mxu0 0.0
        %1500 = vmatprep.subr.mxu0 0.0
        %1501 = vmatpush1.msra.mxu0 0.0
        %1502 = vmatprep.subr.mxu0 0.0
        %1503 = vmatpush1.msra.mxu0 0.0
        %1504 = vmatprep.subr.mxu0 0.0
        %1505 = vmatpush1.msra.mxu0 0.0
        %1506 = vmatprep.subr.mxu0 0.0
        %1507 = vmatpush1.msra.mxu0 0.0
        %1508 = vmatprep.subr.mxu0 0.0
        %1509 = vmatpush1.msra.mxu0 0.0
        %1510 = vmatprep.subr.mxu0 0.0
        %1511 = vmatpush1.msra.mxu0 0.0
        %1512 = vmatprep.subr.mxu0 0.0
        %1513 = vmatpush1.msra.mxu0 0.0
        %1514 = vmatprep.subr.mxu0 0.0
        %1515 = vmatpush1.msra.mxu0 0.0
        %1516 = vmatprep.subr.mxu0 0.0
        %1517 = vmatpush1.msra.mxu0 0.0
        %1518 = vmatprep.subr.mxu0 0.0
        %1519 = vmatpush1.msra.mxu0 0.0
        %1520 = vmatprep.subr.mxu0 0.0
        %1521 = vmatpush1.msra.mxu0 0.0
        %1522 = vmatprep.subr.mxu0 0.0
        %1523 = vmatpush1.msra.mxu0 0.0
        %1524 = vmatprep.subr.mxu0 0.0
        %1525 = vmatpush1.msra.mxu0 0.0
        %1526 = vmatprep.subr.mxu0 0.0
        %1527 = vmatpush1.msra.mxu0 0.0
        %1528 = vmatprep.subr.mxu0 0.0
        %1529 = vmatpush1.msra.mxu0 0.0
        %1530 = vmatprep.subr.mxu0 0.0
        %1531 = vmatpush1.msra.mxu0 0.0
        %1532 = vmatprep.subr.mxu0 0.0
        %1533 = vmatpush1.msra.mxu0 0.0
        %1534 = vmatprep.subr.mxu0 0.0
        %1535 = vmatpush1.msra.mxu0 0.0
        %1536 = vmatprep.subr.mxu0 0.0
        %1537 = vmatpush1.msra.mxu0 0.0
        %1538 = vmatprep.subr.mxu0 0.0
        %1539 = vmatpush1.msra.mxu0 0.0
        %1540 = vmatprep.subr.mxu0 0.0
        %1541 = vmatpush1.msra.mxu0 0.0
        %1542 = vmatprep.subr.mxu0 0.0
        %1543 = vmatpush1.msra.mxu0 0.0
        %1544 = vmatprep.subr.mxu0 0.0
        %1545 = vmatpush1.msra.mxu0 0.0
        %1546 = vmatprep.subr.mxu0 0.0
        %1547 = vmatpush1.msra.mxu0 0.0
        %1548 = vmatprep.subr.mxu0 0.0
        %1549 = vmatpush1.msra.mxu0 0.0
        %1550 = vmatprep.subr.mxu0 0.0
        %1551 = vmatpush1.msra.mxu0 0.0
        %1552 = vmatprep.subr.mxu0 0.0
        %1553 = vmatpush1.msra.mxu0 0.0
        %1554 = vmatprep.subr.mxu0 0.0
        %1555 = vmatpush1.msra.mxu0 0.0
        %1556 = vmatprep.mubr.f32.mxu0 0.0
        %1557 = vmatmul.mubr.f32.gmra.mrb[0].mxu0 %v1490
        %v1558 = vpop.f32.mrb[0].mxu0
        %v1559 = vadd.f32 0.0, %v1558
        %v1560 = vpop.f32.mrb[0].mxu0
        %1561 = vdwg.mxu0
        %v1562 = vadd.f32 %v1244, %v1559
        %1563 = vmatprep.subr.mxu0 0.0
        %1564 = vmatpush1.msra.mxu0 %v1562
        %1565 = vmatprep.subr.mxu0 0.0
        %1566 = vmatpush1.msra.mxu0 0.0
        %1567 = vmatprep.subr.mxu0 0.0
        %1568 = vmatpush1.msra.mxu0 0.0
        %1569 = vmatprep.subr.mxu0 0.0
        %1570 = vmatpush1.msra.mxu0 0.0
        %1571 = vmatprep.subr.mxu0 0.0
        %1572 = vmatpush1.msra.mxu0 0.0
        %1573 = vmatprep.subr.mxu0 0.0
        %1574 = vmatpush1.msra.mxu0 0.0
        %1575 = vmatprep.subr.mxu0 0.0
        %1576 = vmatpush1.msra.mxu0 0.0
        %1577 = vmatprep.subr.mxu0 0.0
        %1578 = vmatpush1.msra.mxu0 0.0
        %1579 = vmatprep.subr.mxu0 0.0
        %1580 = vmatpush1.msra.mxu0 0.0
        %1581 = vmatprep.subr.mxu0 0.0
        %1582 = vmatpush1.msra.mxu0 0.0
        %1583 = vmatprep.subr.mxu0 0.0
        %1584 = vmatpush1.msra.mxu0 0.0
        %1585 = vmatprep.subr.mxu0 0.0
        %1586 = vmatpush1.msra.mxu0 0.0
        %1587 = vmatprep.subr.mxu0 0.0
        %1588 = vmatpush1.msra.mxu0 0.0
        %1589 = vmatprep.subr.mxu0 0.0
        %1590 = vmatpush1.msra.mxu0 0.0
        %1591 = vmatprep.subr.mxu0 0.0
        %1592 = vmatpush1.msra.mxu0 0.0
        %1593 = vmatprep.subr.mxu0 0.0
        %1594 = vmatpush1.msra.mxu0 0.0
        %1595 = vmatprep.subr.mxu0 0.0
        %1596 = vmatpush1.msra.mxu0 0.0
        %1597 = vmatprep.subr.mxu0 0.0
        %1598 = vmatpush1.msra.mxu0 0.0
        %1599 = vmatprep.subr.mxu0 0.0
        %1600 = vmatpush1.msra.mxu0 0.0
        %1601 = vmatprep.subr.mxu0 0.0
        %1602 = vmatpush1.msra.mxu0 0.0
        %1603 = vmatprep.subr.mxu0 0.0
        %1604 = vmatpush1.msra.mxu0 0.0
        %1605 = vmatprep.subr.mxu0 0.0
        %1606 = vmatpush1.msra.mxu0 0.0
        %1607 = vmatprep.subr.mxu0 0.0
        %1608 = vmatpush1.msra.mxu0 0.0
        %1609 = vmatprep.subr.mxu0 0.0
        %1610 = vmatpush1.msra.mxu0 0.0
        %1611 = vmatprep.subr.mxu0 0.0
        %1612 = vmatpush1.msra.mxu0 0.0
        %1613 = vmatprep.subr.mxu0 0.0
        %1614 = vmatpush1.msra.mxu0 0.0
        %1615 = vmatprep.subr.mxu0 0.0
        %1616 = vmatpush1.msra.mxu0 0.0
        %1617 = vmatprep.subr.mxu0 0.0
        %1618 = vmatpush1.msra.mxu0 0.0
        %1619 = vmatprep.subr.mxu0 0.0
        %1620 = vmatpush1.msra.mxu0 0.0
        %1621 = vmatprep.subr.mxu0 0.0
        %1622 = vmatpush1.msra.mxu0 0.0
        %1623 = vmatprep.subr.mxu0 0.0
        %1624 = vmatpush1.msra.mxu0 0.0
        %1625 = vmatprep.subr.mxu0 0.0
        %1626 = vmatpush1.msra.mxu0 0.0
        %1627 = vmatprep.mubr.f32.mxu0 0.0
        %1628 = vmatmul.mubr.f32.gmra.mrb[0].mxu0 %v638
        %v1629 = vpop.f32.mrb[0].mxu0
        %v1630 = vadd.f32 0.0, %v1629
        %v1631 = vpop.f32.mrb[0].mxu0
        %1632 = vmatprep.mubr.f32.mxu0 0.0
        %1633 = vmatmul.mubr.f32.gmra.mrb[0].mxu0 %v641
        %v1634 = vpop.f32.mrb[0].mxu0
        %v1635 = vadd.f32 0.0, %v1634
        %v1636 = vpop.f32.mrb[0].mxu0
        %1637 = vmatprep.mubr.f32.mxu0 0.0
        %1638 = vmatmul.mubr.f32.gmra.mrb[0].mxu0 %v644
        %v1639 = vpop.f32.mrb[0].mxu0
        %v1640 = vadd.f32 0.0, %v1639
        %v1641 = vpop.f32.mrb[0].mxu0
        %1642 = vmatprep.mubr.f32.mxu0 0.0
        %1643 = vmatmul.mubr.f32.gmra.mrb[0].mxu0 %v647
        %v1644 = vpop.f32.mrb[0].mxu0
        %v1645 = vadd.f32 0.0, %v1644
        %v1646 = vpop.f32.mrb[0].mxu0
        %1647 = vdwg.mxu0
        %v1648 = vadd.f32 %v1471, %v1630
        %v1649 = vadd.f32 %v1476, %v1635
        %v1650 = vadd.f32 %v1481, %v1640
        %v1651 = vadd.f32 %v1486, %v1645
        %1652 = vxpose.xlu0.b32.start [1/16] %v1648, 128
        %1653 = vxpose.xlu0.b32.cont [2/16] %v1649, 128
        %1654 = vxpose.xlu0.b32.cont [3/16] %v1650, 128
        %1655 = vxpose.xlu0.b32.cont [4/16] %v1651, 128
        %1656 = vxpose.xlu0.b32.cont [5/16] 0.0, 128
        %1657 = vxpose.xlu0.b32.cont [6/16] 0.0, 128
        %1658 = vxpose.xlu0.b32.cont [7/16] 0.0, 128
        %1659 = vxpose.xlu0.b32.cont [8/16] 0.0, 128
        %1660 = vxpose.xlu0.b32.cont [9/16] 0.0, 128
        %1661 = vxpose.xlu0.b32.cont [10/16] 0.0, 128
        %1662 = vxpose.xlu0.b32.cont [11/16] 0.0, 128
        %1663 = vxpose.xlu0.b32.cont [12/16] 0.0, 128
        %1664 = vxpose.xlu0.b32.cont [13/16] 0.0, 128
        %1665 = vxpose.xlu0.b32.cont [14/16] 0.0, 128
        %1666 = vxpose.xlu0.b32.cont [15/16] 0.0, 128
        %1667 = vxpose.xlu0.b32.end [16/16] 0.0, 128
        %v1668 = vpop.trf.xlu0
        %v1669 = vpop.trf.xlu0
        %v1670 = vpop.trf.xlu0
        %v1671 = vpop.trf.xlu0
        %v1672 = vpop.trf.xlu0
        %v1673 = vpop.trf.xlu0
        %v1674 = vpop.trf.xlu0
        %v1675 = vpop.trf.xlu0
        %v1676 = vpop.trf.xlu0
        %v1677 = vpop.trf.xlu0
        %v1678 = vpop.trf.xlu0
        %v1679 = vpop.trf.xlu0
        %v1680 = vpop.trf.xlu0
        %v1681 = vpop.trf.xlu0
        %v1682 = vpop.trf.xlu0
        %v1683 = vpop.trf.xlu0
        %v1684 = vadd.f32 %v1668, %v774
        %v1685 = vadd.f32 %v1669, %v774
        %s1686 = scalar_lea.vmem %s259, 32 [#allocation5]
        %1687 = vst.msk [vmem:[%s1686] sm:$0xff] %vm778, %v1684
        %1688 = vst.msk [vmem:[%s1686 + $0x8] sm:$0xff] %vm778, %v1685
        %s1689 = scalar_lea.vmem %s228, 48 [#allocation2]
        %v1690 = vld [vmem:[%s1689] sm:$0xff]
        %v1691 = vld [vmem:[%s1689 + $0x8] sm:$0xff]
        %v1692 = vmul.f32 %v1690, 0.475
        %v1693 = vmul.f32 %v1691, 0.475
        %v1694 = vadd.f32 %v1692, %v270
        %v1695 = vadd.f32 %v1693, %v271
        %s1696 = scalar_lea.vmem %s264, 24
        %v1697 = vld [vmem:[%s1696] sm:$0xff]
        %v1698 = vmul.f32 %v1697, 0.05
        %v1700 = vsel %vm293, %v1697, 0
        %1702 = vmatprep.subr.mxu0 0.0
        %1703 = vmatpush1.msra.mxu0 %v1694
        %1704 = vmatprep.subr.mxu0 0.0
        %1705 = vmatpush1.msra.mxu0 %v1695
        %1706 = vmatprep.subr.mxu0 0.0
        %1707 = vmatpush1.msra.mxu0 0.0
        %1708 = vmatprep.subr.mxu0 0.0
        %1709 = vmatpush1.msra.mxu0 0.0
        %1710 = vmatprep.subr.mxu0 0.0
        %1711 = vmatpush1.msra.mxu0 0.0
        %1712 = vmatprep.subr.mxu0 0.0
        %1713 = vmatpush1.msra.mxu0 0.0
        %1714 = vmatprep.subr.mxu0 0.0
        %1715 = vmatpush1.msra.mxu0 0.0
        %1716 = vmatprep.subr.mxu0 0.0
        %1717 = vmatpush1.msra.mxu0 0.0
        %1718 = vmatprep.subr.mxu0 0.0
        %1719 = vmatpush1.msra.mxu0 0.0
        %1720 = vmatprep.subr.mxu0 0.0
        %1721 = vmatpush1.msra.mxu0 0.0
        %1722 = vmatprep.subr.mxu0 0.0
        %1723 = vmatpush1.msra.mxu0 0.0
        %1724 = vmatprep.subr.mxu0 0.0
        %1725 = vmatpush1.msra.mxu0 0.0
        %1726 = vmatprep.subr.mxu0 0.0
        %1727 = vmatpush1.msra.mxu0 0.0
        %1728 = vmatprep.subr.mxu0 0.0
        %1729 = vmatpush1.msra.mxu0 0.0
        %1730 = vmatprep.subr.mxu0 0.0
        %1731 = vmatpush1.msra.mxu0 0.0
        %1732 = vmatprep.subr.mxu0 0.0
        %1733 = vmatpush1.msra.mxu0 0.0
        %1734 = vmatprep.subr.mxu0 0.0
        %1735 = vmatpush1.msra.mxu0 0.0
        %1736 = vmatprep.subr.mxu0 0.0
        %1737 = vmatpush1.msra.mxu0 0.0
        %1738 = vmatprep.subr.mxu0 0.0
        %1739 = vmatpush1.msra.mxu0 0.0
        %1740 = vmatprep.subr.mxu0 0.0
        %1741 = vmatpush1.msra.mxu0 0.0
        %1742 = vmatprep.subr.mxu0 0.0
        %1743 = vmatpush1.msra.mxu0 0.0
        %1744 = vmatprep.subr.mxu0 0.0
        %1745 = vmatpush1.msra.mxu0 0.0
        %1746 = vmatprep.subr.mxu0 0.0
        %1747 = vmatpush1.msra.mxu0 0.0
        %1748 = vmatprep.subr.mxu0 0.0
        %1749 = vmatpush1.msra.mxu0 0.0
        %1750 = vmatprep.subr.mxu0 0.0
        %1751 = vmatpush1.msra.mxu0 0.0
        %1752 = vmatprep.subr.mxu0 0.0
        %1753 = vmatpush1.msra.mxu0 0.0
        %1754 = vmatprep.subr.mxu0 0.0
        %1755 = vmatpush1.msra.mxu0 0.0
        %1756 = vmatprep.subr.mxu0 0.0
        %1757 = vmatpush1.msra.mxu0 0.0
        %1758 = vmatprep.subr.mxu0 0.0
        %1759 = vmatpush1.msra.mxu0 0.0
        %1760 = vmatprep.subr.mxu0 0.0
        %1761 = vmatpush1.msra.mxu0 0.0
        %1762 = vmatprep.subr.mxu0 0.0
        %1763 = vmatpush1.msra.mxu0 0.0
        %1764 = vmatprep.subr.mxu0 0.0
        %1765 = vmatpush1.msra.mxu0 0.0
        %1766 = vmatprep.mubr.f32.mxu0 0.0
        %1767 = vmatmul.mubr.f32.gmra.mrb[0].mxu0 %v1700
        %v1768 = vpop.f32.mrb[0].mxu0
        %v1769 = vadd.f32 0.0, %v1768
        %v1770 = vpop.f32.mrb[0].mxu0
        %1771 = vdwg.mxu0
        %v1772 = vadd.f32 %v1698, %v1769
        %1773 = vmatprep.subr.mxu0 0.0
        %1774 = vmatpush1.msra.mxu0 %v1772
        %1775 = vmatprep.subr.mxu0 0.0
        %1776 = vmatpush1.msra.mxu0 0.0
        %1777 = vmatprep.subr.mxu0 0.0
        %1778 = vmatpush1.msra.mxu0 0.0
        %1779 = vmatprep.subr.mxu0 0.0
        %1780 = vmatpush1.msra.mxu0 0.0
        %1781 = vmatprep.subr.mxu0 0.0
        %1782 = vmatpush1.msra.mxu0 0.0
        %1783 = vmatprep.subr.mxu0 0.0
        %1784 = vmatpush1.msra.mxu0 0.0
        %1785 = vmatprep.subr.mxu0 0.0
        %1786 = vmatpush1.msra.mxu0 0.0
        %1787 = vmatprep.subr.mxu0 0.0
        %1788 = vmatpush1.msra.mxu0 0.0
        %1789 = vmatprep.subr.mxu0 0.0
        %1790 = vmatpush1.msra.mxu0 0.0
        %1791 = vmatprep.subr.mxu0 0.0
        %1792 = vmatpush1.msra.mxu0 0.0
        %1793 = vmatprep.subr.mxu0 0.0
        %1794 = vmatpush1.msra.mxu0 0.0
        %1795 = vmatprep.subr.mxu0 0.0
        %1796 = vmatpush1.msra.mxu0 0.0
        %1797 = vmatprep.subr.mxu0 0.0
        %1798 = vmatpush1.msra.mxu0 0.0
        %1799 = vmatprep.subr.mxu0 0.0
        %1800 = vmatpush1.msra.mxu0 0.0
        %1801 = vmatprep.subr.mxu0 0.0
        %1802 = vmatpush1.msra.mxu0 0.0
        %1803 = vmatprep.subr.mxu0 0.0
        %1804 = vmatpush1.msra.mxu0 0.0
        %1805 = vmatprep.subr.mxu0 0.0
        %1806 = vmatpush1.msra.mxu0 0.0
        %1807 = vmatprep.subr.mxu0 0.0
        %1808 = vmatpush1.msra.mxu0 0.0
        %1809 = vmatprep.subr.mxu0 0.0
        %1810 = vmatpush1.msra.mxu0 0.0
        %1811 = vmatprep.subr.mxu0 0.0
        %1812 = vmatpush1.msra.mxu0 0.0
        %1813 = vmatprep.subr.mxu0 0.0
        %1814 = vmatpush1.msra.mxu0 0.0
        %1815 = vmatprep.subr.mxu0 0.0
        %1816 = vmatpush1.msra.mxu0 0.0
        %1817 = vmatprep.subr.mxu0 0.0
        %1818 = vmatpush1.msra.mxu0 0.0
        %1819 = vmatprep.subr.mxu0 0.0
        %1820 = vmatpush1.msra.mxu0 0.0
        %1821 = vmatprep.subr.mxu0 0.0
        %1822 = vmatpush1.msra.mxu0 0.0
        %1823 = vmatprep.subr.mxu0 0.0
        %1824 = vmatpush1.msra.mxu0 0.0
        %1825 = vmatprep.subr.mxu0 0.0
        %1826 = vmatpush1.msra.mxu0 0.0
        %1827 = vmatprep.subr.mxu0 0.0
        %1828 = vmatpush1.msra.mxu0 0.0
        %1829 = vmatprep.subr.mxu0 0.0
        %1830 = vmatpush1.msra.mxu0 0.0
        %1831 = vmatprep.subr.mxu0 0.0
        %1832 = vmatpush1.msra.mxu0 0.0
        %1833 = vmatprep.subr.mxu0 0.0
        %1834 = vmatpush1.msra.mxu0 0.0
        %1835 = vmatprep.subr.mxu0 0.0
        %1836 = vmatpush1.msra.mxu0 0.0
        %1837 = vmatprep.mubr.f32.mxu0 0.0
        %1838 = vmatmul.mubr.f32.gmra.mrb[0].mxu0 %v370
        %v1839 = vpop.f32.mrb[0].mxu0
        %v1840 = vadd.f32 0.0, %v1839
        %v1841 = vpop.f32.mrb[0].mxu0
        %1842 = vmatprep.mubr.f32.mxu0 0.0
        %1843 = vmatmul.mubr.f32.gmra.mrb[0].mxu0 %v373
        %v1844 = vpop.f32.mrb[0].mxu0
        %v1845 = vadd.f32 0.0, %v1844
        %v1846 = vpop.f32.mrb[0].mxu0
        %1847 = vmatprep.mubr.f32.mxu0 0.0
        %1848 = vmatmul.mubr.f32.gmra.mrb[0].mxu0 %v376
        %v1849 = vpop.f32.mrb[0].mxu0
        %v1850 = vadd.f32 0.0, %v1849
        %v1851 = vpop.f32.mrb[0].mxu0
        %1852 = vmatprep.mubr.f32.mxu0 0.0
        %1853 = vmatmul.mubr.f32.gmra.mrb[0].mxu0 %v379
        %v1854 = vpop.f32.mrb[0].mxu0
        %v1855 = vadd.f32 0.0, %v1854
        %v1856 = vpop.f32.mrb[0].mxu0
        %1857 = vdwg.mxu0
        %1858 = vmatprep.subr.mxu0 0.0
        %1859 = vmatpush1.msra.mxu0 %v1697
        %1860 = vmatprep.subr.mxu0 0.0
        %1861 = vmatpush1.msra.mxu0 0.0
        %1862 = vmatprep.subr.mxu0 0.0
        %1863 = vmatpush1.msra.mxu0 0.0
        %1864 = vmatprep.subr.mxu0 0.0
        %1865 = vmatpush1.msra.mxu0 0.0
        %1866 = vmatprep.subr.mxu0 0.0
        %1867 = vmatpush1.msra.mxu0 0.0
        %1868 = vmatprep.subr.mxu0 0.0
        %1869 = vmatpush1.msra.mxu0 0.0
        %1870 = vmatprep.subr.mxu0 0.0
        %1871 = vmatpush1.msra.mxu0 0.0
        %1872 = vmatprep.subr.mxu0 0.0
        %1873 = vmatpush1.msra.mxu0 0.0
        %1874 = vmatprep.subr.mxu0 0.0
        %1875 = vmatpush1.msra.mxu0 0.0
        %1876 = vmatprep.subr.mxu0 0.0
        %1877 = vmatpush1.msra.mxu0 0.0
        %1878 = vmatprep.subr.mxu0 0.0
        %1879 = vmatpush1.msra.mxu0 0.0
        %1880 = vmatprep.subr.mxu0 0.0
        %1881 = vmatpush1.msra.mxu0 0.0
        %1882 = vmatprep.subr.mxu0 0.0
        %1883 = vmatpush1.msra.mxu0 0.0
        %1884 = vmatprep.subr.mxu0 0.0
        %1885 = vmatpush1.msra.mxu0 0.0
        %1886 = vmatprep.subr.mxu0 0.0
        %1887 = vmatpush1.msra.mxu0 0.0
        %1888 = vmatprep.subr.mxu0 0.0
        %1889 = vmatpush1.msra.mxu0 0.0
        %1890 = vmatprep.subr.mxu0 0.0
        %1891 = vmatpush1.msra.mxu0 0.0
        %1892 = vmatprep.subr.mxu0 0.0
        %1893 = vmatpush1.msra.mxu0 0.0
        %1894 = vmatprep.subr.mxu0 0.0
        %1895 = vmatpush1.msra.mxu0 0.0
        %1896 = vmatprep.subr.mxu0 0.0
        %1897 = vmatpush1.msra.mxu0 0.0
        %1898 = vmatprep.subr.mxu0 0.0
        %1899 = vmatpush1.msra.mxu0 0.0
        %1900 = vmatprep.subr.mxu0 0.0
        %1901 = vmatpush1.msra.mxu0 0.0
        %1902 = vmatprep.subr.mxu0 0.0
        %1903 = vmatpush1.msra.mxu0 0.0
        %1904 = vmatprep.subr.mxu0 0.0
        %1905 = vmatpush1.msra.mxu0 0.0
        %1906 = vmatprep.subr.mxu0 0.0
        %1907 = vmatpush1.msra.mxu0 0.0
        %1908 = vmatprep.subr.mxu0 0.0
        %1909 = vmatpush1.msra.mxu0 0.0
        %1910 = vmatprep.subr.mxu0 0.0
        %1911 = vmatpush1.msra.mxu0 0.0
        %1912 = vmatprep.subr.mxu0 0.0
        %1913 = vmatpush1.msra.mxu0 0.0
        %1914 = vmatprep.subr.mxu0 0.0
        %1915 = vmatpush1.msra.mxu0 0.0
        %1916 = vmatprep.subr.mxu0 0.0
        %1917 = vmatpush1.msra.mxu0 0.0
        %1918 = vmatprep.subr.mxu0 0.0
        %1919 = vmatpush1.msra.mxu0 0.0
        %1920 = vmatprep.subr.mxu0 0.0
        %1921 = vmatpush1.msra.mxu0 0.0
        %1922 = vmatprep.mubr.f32.mxu0 0.0
        %1923 = vmatmul.mubr.f32.gmra.mrb[0].mxu0 %v467
        %v1924 = vpop.f32.mrb[0].mxu0
        %v1925 = vadd.f32 %v1840, %v1924
        %v1926 = vpop.f32.mrb[0].mxu0
        %1927 = vmatprep.mubr.f32.mxu0 0.0
        %1928 = vmatmul.mubr.f32.gmra.mrb[0].mxu0 %v470
        %v1929 = vpop.f32.mrb[0].mxu0
        %v1930 = vadd.f32 %v1845, %v1929
        %v1931 = vpop.f32.mrb[0].mxu0
        %1932 = vmatprep.mubr.f32.mxu0 0.0
        %1933 = vmatmul.mubr.f32.gmra.mrb[0].mxu0 %v473
        %v1934 = vpop.f32.mrb[0].mxu0
        %v1935 = vadd.f32 %v1850, %v1934
        %v1936 = vpop.f32.mrb[0].mxu0
        %1937 = vmatprep.mubr.f32.mxu0 0.0
        %1938 = vmatmul.mubr.f32.gmra.mrb[0].mxu0 %v476
        %v1939 = vpop.f32.mrb[0].mxu0
        %v1940 = vadd.f32 %v1855, %v1939
        %v1941 = vpop.f32.mrb[0].mxu0
        %1942 = vdwg.mxu0
        %v1944 = vsel %vm293, %v1772, 0
        %1946 = vmatprep.subr.mxu0 0.0
        %1947 = vmatpush1.msra.mxu0 %v1694
        %1948 = vmatprep.subr.mxu0 0.0
        %1949 = vmatpush1.msra.mxu0 %v1695
        %1950 = vmatprep.subr.mxu0 0.0
        %1951 = vmatpush1.msra.mxu0 0.0
        %1952 = vmatprep.subr.mxu0 0.0
        %1953 = vmatpush1.msra.mxu0 0.0
        %1954 = vmatprep.subr.mxu0 0.0
        %1955 = vmatpush1.msra.mxu0 0.0
        %1956 = vmatprep.subr.mxu0 0.0
        %1957 = vmatpush1.msra.mxu0 0.0
        %1958 = vmatprep.subr.mxu0 0.0
        %1959 = vmatpush1.msra.mxu0 0.0
        %1960 = vmatprep.subr.mxu0 0.0
        %1961 = vmatpush1.msra.mxu0 0.0
        %1962 = vmatprep.subr.mxu0 0.0
        %1963 = vmatpush1.msra.mxu0 0.0
        %1964 = vmatprep.subr.mxu0 0.0
        %1965 = vmatpush1.msra.mxu0 0.0
        %1966 = vmatprep.subr.mxu0 0.0
        %1967 = vmatpush1.msra.mxu0 0.0
        %1968 = vmatprep.subr.mxu0 0.0
        %1969 = vmatpush1.msra.mxu0 0.0
        %1970 = vmatprep.subr.mxu0 0.0
        %1971 = vmatpush1.msra.mxu0 0.0
        %1972 = vmatprep.subr.mxu0 0.0
        %1973 = vmatpush1.msra.mxu0 0.0
        %1974 = vmatprep.subr.mxu0 0.0
        %1975 = vmatpush1.msra.mxu0 0.0
        %1976 = vmatprep.subr.mxu0 0.0
        %1977 = vmatpush1.msra.mxu0 0.0
        %1978 = vmatprep.subr.mxu0 0.0
        %1979 = vmatpush1.msra.mxu0 0.0
        %1980 = vmatprep.subr.mxu0 0.0
        %1981 = vmatpush1.msra.mxu0 0.0
        %1982 = vmatprep.subr.mxu0 0.0
        %1983 = vmatpush1.msra.mxu0 0.0
        %1984 = vmatprep.subr.mxu0 0.0
        %1985 = vmatpush1.msra.mxu0 0.0
        %1986 = vmatprep.subr.mxu0 0.0
        %1987 = vmatpush1.msra.mxu0 0.0
        %1988 = vmatprep.subr.mxu0 0.0
        %1989 = vmatpush1.msra.mxu0 0.0
        %1990 = vmatprep.subr.mxu0 0.0
        %1991 = vmatpush1.msra.mxu0 0.0
        %1992 = vmatprep.subr.mxu0 0.0
        %1993 = vmatpush1.msra.mxu0 0.0
        %1994 = vmatprep.subr.mxu0 0.0
        %1995 = vmatpush1.msra.mxu0 0.0
        %1996 = vmatprep.subr.mxu0 0.0
        %1997 = vmatpush1.msra.mxu0 0.0
        %1998 = vmatprep.subr.mxu0 0.0
        %1999 = vmatpush1.msra.mxu0 0.0
        %2000 = vmatprep.subr.mxu0 0.0
        %2001 = vmatpush1.msra.mxu0 0.0
        %2002 = vmatprep.subr.mxu0 0.0
        %2003 = vmatpush1.msra.mxu0 0.0
        %2004 = vmatprep.subr.mxu0 0.0
        %2005 = vmatpush1.msra.mxu0 0.0
        %2006 = vmatprep.subr.mxu0 0.0
        %2007 = vmatpush1.msra.mxu0 0.0
        %2008 = vmatprep.subr.mxu0 0.0
        %2009 = vmatpush1.msra.mxu0 0.0
        %2010 = vmatprep.mubr.f32.mxu0 0.0
        %2011 = vmatmul.mubr.f32.gmra.mrb[0].mxu0 %v1944
        %v2012 = vpop.f32.mrb[0].mxu0
        %v2013 = vadd.f32 0.0, %v2012
        %v2014 = vpop.f32.mrb[0].mxu0
        %2015 = vdwg.mxu0
        %v2016 = vadd.f32 %v1698, %v2013
        %2017 = vmatprep.subr.mxu0 0.0
        %2018 = vmatpush1.msra.mxu0 %v2016
        %2019 = vmatprep.subr.mxu0 0.0
        %2020 = vmatpush1.msra.mxu0 0.0
        %2021 = vmatprep.subr.mxu0 0.0
        %2022 = vmatpush1.msra.mxu0 0.0
        %2023 = vmatprep.subr.mxu0 0.0
        %2024 = vmatpush1.msra.mxu0 0.0
        %2025 = vmatprep.subr.mxu0 0.0
        %2026 = vmatpush1.msra.mxu0 0.0
        %2027 = vmatprep.subr.mxu0 0.0
        %2028 = vmatpush1.msra.mxu0 0.0
        %2029 = vmatprep.subr.mxu0 0.0
        %2030 = vmatpush1.msra.mxu0 0.0
        %2031 = vmatprep.subr.mxu0 0.0
        %2032 = vmatpush1.msra.mxu0 0.0
        %2033 = vmatprep.subr.mxu0 0.0
        %2034 = vmatpush1.msra.mxu0 0.0
        %2035 = vmatprep.subr.mxu0 0.0
        %2036 = vmatpush1.msra.mxu0 0.0
        %2037 = vmatprep.subr.mxu0 0.0
        %2038 = vmatpush1.msra.mxu0 0.0
        %2039 = vmatprep.subr.mxu0 0.0
        %2040 = vmatpush1.msra.mxu0 0.0
        %2041 = vmatprep.subr.mxu0 0.0
        %2042 = vmatpush1.msra.mxu0 0.0
        %2043 = vmatprep.subr.mxu0 0.0
        %2044 = vmatpush1.msra.mxu0 0.0
        %2045 = vmatprep.subr.mxu0 0.0
        %2046 = vmatpush1.msra.mxu0 0.0
        %2047 = vmatprep.subr.mxu0 0.0
        %2048 = vmatpush1.msra.mxu0 0.0
        %2049 = vmatprep.subr.mxu0 0.0
        %2050 = vmatpush1.msra.mxu0 0.0
        %2051 = vmatprep.subr.mxu0 0.0
        %2052 = vmatpush1.msra.mxu0 0.0
        %2053 = vmatprep.subr.mxu0 0.0
        %2054 = vmatpush1.msra.mxu0 0.0
        %2055 = vmatprep.subr.mxu0 0.0
        %2056 = vmatpush1.msra.mxu0 0.0
        %2057 = vmatprep.subr.mxu0 0.0
        %2058 = vmatpush1.msra.mxu0 0.0
        %2059 = vmatprep.subr.mxu0 0.0
        %2060 = vmatpush1.msra.mxu0 0.0
        %2061 = vmatprep.subr.mxu0 0.0
        %2062 = vmatpush1.msra.mxu0 0.0
        %2063 = vmatprep.subr.mxu0 0.0
        %2064 = vmatpush1.msra.mxu0 0.0
        %2065 = vmatprep.subr.mxu0 0.0
        %2066 = vmatpush1.msra.mxu0 0.0
        %2067 = vmatprep.subr.mxu0 0.0
        %2068 = vmatpush1.msra.mxu0 0.0
        %2069 = vmatprep.subr.mxu0 0.0
        %2070 = vmatpush1.msra.mxu0 0.0
        %2071 = vmatprep.subr.mxu0 0.0
        %2072 = vmatpush1.msra.mxu0 0.0
        %2073 = vmatprep.subr.mxu0 0.0
        %2074 = vmatpush1.msra.mxu0 0.0
        %2075 = vmatprep.subr.mxu0 0.0
        %2076 = vmatpush1.msra.mxu0 0.0
        %2077 = vmatprep.subr.mxu0 0.0
        %2078 = vmatpush1.msra.mxu0 0.0
        %2079 = vmatprep.subr.mxu0 0.0
        %2080 = vmatpush1.msra.mxu0 0.0
        %2081 = vmatprep.mubr.f32.mxu0 0.0
        %2082 = vmatmul.mubr.f32.gmra.mrb[0].mxu0 %v638
        %v2083 = vpop.f32.mrb[0].mxu0
        %v2084 = vadd.f32 0.0, %v2083
        %v2085 = vpop.f32.mrb[0].mxu0
        %2086 = vmatprep.mubr.f32.mxu0 0.0
        %2087 = vmatmul.mubr.f32.gmra.mrb[0].mxu0 %v641
        %v2088 = vpop.f32.mrb[0].mxu0
        %v2089 = vadd.f32 0.0, %v2088
        %v2090 = vpop.f32.mrb[0].mxu0
        %2091 = vmatprep.mubr.f32.mxu0 0.0
        %2092 = vmatmul.mubr.f32.gmra.mrb[0].mxu0 %v644
        %v2093 = vpop.f32.mrb[0].mxu0
        %v2094 = vadd.f32 0.0, %v2093
        %v2095 = vpop.f32.mrb[0].mxu0
        %2096 = vmatprep.mubr.f32.mxu0 0.0
        %2097 = vmatmul.mubr.f32.gmra.mrb[0].mxu0 %v647
        %v2098 = vpop.f32.mrb[0].mxu0
        %v2099 = vadd.f32 0.0, %v2098
        %v2100 = vpop.f32.mrb[0].mxu0
        %2101 = vdwg.mxu0
        %v2102 = vadd.f32 %v1925, %v2084
        %v2103 = vadd.f32 %v1930, %v2089
        %v2104 = vadd.f32 %v1935, %v2094
        %v2105 = vadd.f32 %v1940, %v2099
        %2106 = vxpose.xlu0.b32.start [1/16] %v2102, 128
        %2107 = vxpose.xlu0.b32.cont [2/16] %v2103, 128
        %2108 = vxpose.xlu0.b32.cont [3/16] %v2104, 128
        %2109 = vxpose.xlu0.b32.cont [4/16] %v2105, 128
        %2110 = vxpose.xlu0.b32.cont [5/16] 0.0, 128
        %2111 = vxpose.xlu0.b32.cont [6/16] 0.0, 128
        %2112 = vxpose.xlu0.b32.cont [7/16] 0.0, 128
        %2113 = vxpose.xlu0.b32.cont [8/16] 0.0, 128
        %2114 = vxpose.xlu0.b32.cont [9/16] 0.0, 128
        %2115 = vxpose.xlu0.b32.cont [10/16] 0.0, 128
        %2116 = vxpose.xlu0.b32.cont [11/16] 0.0, 128
        %2117 = vxpose.xlu0.b32.cont [12/16] 0.0, 128
        %2118 = vxpose.xlu0.b32.cont [13/16] 0.0, 128
        %2119 = vxpose.xlu0.b32.cont [14/16] 0.0, 128
        %2120 = vxpose.xlu0.b32.cont [15/16] 0.0, 128
        %2121 = vxpose.xlu0.b32.end [16/16] 0.0, 128
        %v2122 = vpop.trf.xlu0
        %v2123 = vpop.trf.xlu0
        %v2124 = vpop.trf.xlu0
        %v2125 = vpop.trf.xlu0
        %v2126 = vpop.trf.xlu0
        %v2127 = vpop.trf.xlu0
        %v2128 = vpop.trf.xlu0
        %v2129 = vpop.trf.xlu0
        %v2130 = vpop.trf.xlu0
        %v2131 = vpop.trf.xlu0
        %v2132 = vpop.trf.xlu0
        %v2133 = vpop.trf.xlu0
        %v2134 = vpop.trf.xlu0
        %v2135 = vpop.trf.xlu0
        %v2136 = vpop.trf.xlu0
        %v2137 = vpop.trf.xlu0
        %v2138 = vadd.f32 %v2122, %v774
        %v2139 = vadd.f32 %v2123, %v774
        %s2140 = scalar_lea.vmem %s259, 48 [#allocation5]
        %2141 = vst.msk [vmem:[%s2140] sm:$0xff] %vm778, %v2138
        %2142 = vst.msk [vmem:[%s2140 + $0x8] sm:$0xff] %vm778, %v2139
        %s2143 = sand.u32 %s145, 1
        %s2144 = scalar_lea.sflag [#allocation4], %s2143
        %s2145 = sand.u32 %s145, 1
        %s2146 = smul.addr %s2145, 64
        %s2147 = scalar_lea.vmem [#allocation5], %s2146
        // Predicated region
        $region45: #{tpu_custom_call.1} parent=39 // pred_check
          %p2148 = pneg %p155
        $region46: #{tpu_custom_call.1} parent=39 // pred_check_branch
          %2150 = sbr.rel (%p2148) target = $region48
        $region47: #{tpu_custom_call.1} parent=39 // pred_region
          %s2151 = smul.u32 4, %s22
          %s2153 = ssub.s32 1024, 1024
          %2154 = vsyncadd %s2144, %s2153
          %s2155 = smul.addr %s2151, 2
          %s2156 = smul.addr %s2155, 128
          %s2157 = scalar_lea.hbm %s5, %s2156
          %s2158 = sshll.u32 %s2147, 4
          %s2159 = int_to_ptr.vmem [resolvable:$true] %s2158
          %2164 = dma.vmem_to_hbm [thread:$0]  %s2159, 1024, %s2157, %s2144, 128, 128, 8
        $region48: #{tpu_custom_call.1} parent=39 // pred_fallthru
          _
      $region40: #{tpu_custom_call.1} parent=5 // pred_fallthru
        _
      %p2165 = scmp.le.s32.totalorder 2, %s17
      // Predicated region
      $region49: #{tpu_custom_call.1} parent=5 // pred_check
        %p2166 = pneg %p2165
      $region50: #{tpu_custom_call.1} parent=5 // pred_check_branch
        %2168 = sbr.rel (%p2166) target = $region52
      $region51: #{tpu_custom_call.1} parent=5 // pred_region
        %s2169 = ssub.s32 %s17, 2
        // Predicated region
        $region53: #{tpu_custom_call.1} parent=51 // pred_check
          %p2170 = pneg %p161
        $region54: #{tpu_custom_call.1} parent=51 // pred_check_branch
          %2172 = sbr.rel (%p2170) target = $region56
        $region55: #{tpu_custom_call.1} parent=51 // pred_region
          %s2173 = sand.u32 %s146, 1
          %s2174 = scalar_lea.sflag [#allocation4], %s2173
          %s2175 = sand.u32 %s146, 1
          %s2176 = smul.addr %s2175, 64
          %s2177 = scalar_lea.vmem [#allocation5], %s2176
          %2178 = dma.done %s2174, 1024
        $region56: #{tpu_custom_call.1} parent=51 // pred_fallthru
          _
      $region52: #{tpu_custom_call.1} parent=5 // pred_fallthru
        _
    $region6: #{tpu_custom_call.1} parent=1 // loop_footer
      %s21 = sadd.s32 1, %s17
    $region7: #{tpu_custom_call.1} parent=1 // loop_footer_branch
      %16 = sbr.rel target = $region3
    $region8: #{tpu_custom_call.1} parent=1 // loop_exit
      _
    %2179 = vsyncpa [#allocation3], 1
    %s2180 = scalar_lea.sflag [#allocation3], 1
    %2181 = vsyncpa %s2180, 1
    %2182 = vsyncpa [#allocation4], 1
    %s2183 = scalar_lea.sflag [#allocation4], 1
    %2184 = vsyncpa %s2183, 1

</llo_original>
